<compile_context>
chip_gen: v5e
topology: v5e:2x2
jax: 0.10.0
libtpu: 0.0.40
codegen_flags: <defaults>
</compile_context>

<pallas_src>
import jax
import jax.numpy as jnp
from jax import lax
from jax.experimental import pallas as pl
from jax.experimental.pallas import tpu as pltpu


_INV_SQRT2 = 0.7071067811865476


def _round_up(a, b):
    return (a + b - 1) // b * b


def _mlc_kernel(x_ref, w1_ref, b1_ref, g_ref, beta_ref, w2_ref, b2_ref, o_ref):
    # --- proj1: (tm, H) @ (H, H) on the MXU, f32 accumulation, native-dtype ops ---
    h = jnp.dot(x_ref[...], w1_ref[...], preferred_element_type=jnp.float32)
    h = h + b1_ref[...].astype(jnp.float32)

    # --- LayerNorm (eps=1e-5, biased variance, affine): centered two-pass stats ---
    inv_h = jnp.float32(1.0 / h.shape[-1])
    mean = jnp.sum(h, axis=-1, keepdims=True) * inv_h
    d = h - mean
    var = jnp.sum(d * d, axis=-1, keepdims=True) * inv_h
    inv = lax.rsqrt(var + jnp.float32(1e-5))
    hn = d * inv * g_ref[...].astype(jnp.float32) + beta_ref[...].astype(jnp.float32)

    # --- GELU (exact, erf-based: matches nn.GELU() default) ---
    hg = 0.5 * hn * (1.0 + lax.erf(hn * jnp.float32(_INV_SQRT2)))

    # --- proj2: (tm, H) @ (H, Cp) -> lane-dense padded output ---
    out = jnp.dot(hg.astype(w2_ref.dtype), w2_ref[...],
                  preferred_element_type=jnp.float32)
    out = out + b2_ref[...].astype(jnp.float32)
    o_ref[...] = out.astype(o_ref.dtype)


def multilabel_classification(x, w1, b1, gamma, beta, w2, b2, *,
                              tm=None, mxu_dtype=None, x_buffers=2):
    """x: [N, H]; w1: [H, H]; b1: [H]; gamma/beta: [H]; w2: [H, C]; b2: [C]."""
    N, H = x.shape
    C = w2.shape[1]
    out_dtype = x.dtype

    # Optional: bf16 MXU operands (LN/GELU math stays in f32 inside the kernel).
    if mxu_dtype is not None:
        x = x.astype(mxu_dtype)
        w1 = w1.astype(mxu_dtype)
        w2 = w2.astype(mxu_dtype)

    # Lane-dense output: pad the class dim up to a multiple of 128 (zero columns).
    Cp = _round_up(C, 128)
    if Cp != C:
        w2 = jnp.pad(w2, ((0, 0), (0, Cp - C)))
        b2 = jnp.pad(b2, ((0, Cp - C),))

    x_isize = jnp.dtype(x.dtype).itemsize
    w_isize = jnp.dtype(w1.dtype).itemsize
    o_isize = jnp.dtype(out_dtype).itemsize

    # Generation-aware VMEM budget (v7x: 64 MiB, v5e/v6e: 128 MiB), ~8 MiB headroom.
    try:
        vmem_cap = int(pltpu.get_tpu_info().vmem_capacity_bytes)
    except Exception:
        vmem_cap = 64 << 20  # conservative (v7x) if the query is unavailable
    budget = max(vmem_cap - (8 << 20), 16 << 20)
    budget = min(budget, 100 << 20)

    # dtype-aware sublane packing: 8 for f32, 16 for bf16, 32 for int8/fp8.
    sub = max(8, 32 // x_isize)

    def vmem_bytes(t):
        return (x_buffers * t * H * x_isize          # x row tile (pipelined)
                + 2 * t * Cp * o_isize               # out tile, double-buffered
                + (H * H + H * Cp) * w_isize         # weights, single-buffered
                + (3 * H + Cp) * 4                   # biases / LN params
                + 4 * t * H * 4)                     # f32 temporaries (h/hn/hg)

    # Row tile: big to amortize per-step overhead, smaller when H is large.
    if tm is None:
        tm = 512 if H <= 1024 else (256 if H <= 2048 else 128)
    tm = _round_up(max(sub, min(tm, _round_up(N, sub))), sub)

    # Megacore (v7x has 2 TCs): make sure the "parallel" axis has >= 2 steps.
    if N > sub and pl.cdiv(N, tm) < 2:
        tm = _round_up(pl.cdiv(N, 2), sub)

    # Shrink tm until the VMEM estimate fits the per-generation budget.
    while tm > sub and vmem_bytes(tm) > budget:
        tm = _round_up(tm // 2, sub)

    grid = (pl.cdiv(N, tm),)   # no wrapper-side pad of x; tail block is masked

    est = vmem_bytes(tm)
    vmem_limit = None
    if est > (32 << 20):  # only raise the scoped default when actually needed
        vmem_limit = min(int(est * 5 // 4), budget)

    # Present 1-row broadcastable params as (1, dim) slabs.
    b1_2d = b1.reshape(1, H)
    g_2d = gamma.reshape(1, H)
    be_2d = beta.reshape(1, H)
    b2_2d = b2.reshape(1, Cp)

    cost = pl.CostEstimate(
        flops=2 * N * H * H + 2 * N * H * Cp,
        transcendentals=N * H,  # erf
        bytes_accessed=(N * H * x_isize + N * Cp * o_isize
                        + (H * H + H * Cp) * w_isize
                        + (3 * H + Cp) * 4),
    )

    def build(single_buffer_weights):
        if single_buffer_weights:
            def const_spec(shape):
                # Grid-invariant operand: one resident buffer is enough.
                return pl.BlockSpec(shape, lambda i: (0, 0),
                                    pipeline_mode=pl.Buffered(1))
            if x_buffers != 2:
                x_spec = pl.BlockSpec((tm, H), lambda i: (i, 0),
                                      pipeline_mode=pl.Buffered(x_buffers))
            else:
                x_spec = pl.BlockSpec((tm, H), lambda i: (i, 0))
        else:
            def const_spec(shape):
                return pl.BlockSpec(shape, lambda i: (0, 0))
            x_spec = pl.BlockSpec((tm, H), lambda i: (i, 0))

        return pl.pallas_call(
            _mlc_kernel,
            out_shape=jax.ShapeDtypeStruct((N, Cp), out_dtype),
            grid_spec=pltpu.PrefetchScalarGridSpec(
                num_scalar_prefetch=0,
                grid=grid,
                in_specs=[
                    x_spec,                     # x row tile
                    const_spec((H, H)),         # w1 (full, resident)
                    const_spec((1, H)),         # b1
                    const_spec((1, H)),         # gamma
                    const_spec((1, H)),         # beta
                    const_spec((H, Cp)),        # w2 (padded, resident)
                    const_spec((1, Cp)),        # b2 (padded)
                ],
                out_specs=pl.BlockSpec((tm, Cp), lambda i: (i, 0)),
            ),
            compiler_params=pltpu.CompilerParams(
                dimension_semantics=("parallel",),
                vmem_limit_bytes=vmem_limit,
            ),
            cost_estimate=cost,
        )

    args = (x, w1, b1_2d, g_2d, be_2d, w2, b2_2d)
    try:
        out = jax.block_until_ready(build(True)(*args))
    except Exception:
        # Fallback: if this jax build rejects pipeline_mode=Buffered(1) on the
        # invariant operands, retry with default double-buffering (correct, just
        # uses more VMEM).
        out = build(False)(*args)

    # Strip the lane padding on the class dim (rows were never padded).
    return out[:, :C] if Cp != C else out


def reference(x, w1, b1, gamma, beta, w2, b2):
    h = x @ w1 + b1
    mean = jnp.mean(h, axis=-1, keepdims=True)
    var = jnp.mean((h - mean) ** 2, axis=-1, keepdims=True)
    hn = (h - mean) * lax.rsqrt(var + 1e-5) * gamma + beta
    hg = 0.5 * hn * (1.0 + lax.erf(hn / jnp.sqrt(2.0).astype(hn.dtype)))
    return hg @ w2 + b2


if __name__ == "__main__":
    # Small, TPU-friendly shapes: 48 rows, hidden_dim=256, num_classes=10
    # (non-multiple-of-128 classes exercises the lane-dense padding path;
    #  48 rows exercises the megacore >=2-grid-step split).
    N, H, C = 48, 256, 10

    key = jax.random.PRNGKey(0)
    kx, k1, k2, k3, k4, k5, k6 = jax.random.split(key, 7)

    x = jax.random.normal(kx, (N, H), dtype=jnp.float32)
    # Deterministic synthetic parameters (not a checkpoint).
    w1 = jax.random.normal(k1, (H, H), dtype=jnp.float32) * (1.0 / jnp.sqrt(H))
    b1 = jax.random.normal(k2, (H,), dtype=jnp.float32) * 0.01
    gamma = 1.0 + 0.1 * jax.random.normal(k5, (H,), dtype=jnp.float32)
    beta = 0.01 * jax.random.normal(k6, (H,), dtype=jnp.float32)
    w2 = jax.random.normal(k3, (H, C), dtype=jnp.float32) * (1.0 / jnp.sqrt(H))
    b2 = jax.random.normal(k4, (C,), dtype=jnp.float32) * 0.01

    out = multilabel_classification(x, w1, b1, gamma, beta, w2, b2)
    out = jax.block_until_ready(out)

    ref = reference(x, w1, b1, gamma, beta, w2, b2)
    assert out.shape == (N, C)
    assert jnp.allclose(out, ref, atol=2e-4, rtol=2e-4), "mismatch vs reference"

    print("KERNEL_OK")
</pallas_src>

<mosaic_0001>
module attributes {stable_mosaic.version = 11 : i64} {
  func.func @_mlc_kernel(%arg0: i32, %arg1: memref<24x256xf32, #tpu.memory_space<vmem>>, %arg2: memref<256x256xf32, #tpu.memory_space<vmem>>, %arg3: memref<1x256xf32, #tpu.memory_space<vmem>>, %arg4: memref<1x256xf32, #tpu.memory_space<vmem>>, %arg5: memref<1x256xf32, #tpu.memory_space<vmem>>, %arg6: memref<256x128xf32, #tpu.memory_space<vmem>>, %arg7: memref<1x128xf32, #tpu.memory_space<vmem>>, %arg8: memref<24x128xf32, #tpu.memory_space<vmem>>) attributes {dimension_semantics = [#tpu.dimension_semantics<parallel>], iteration_bounds = array<i64: 2>, scalar_prefetch = 0 : i64, scratch_operands = 0 : i64, tpu.core_type = #tpu.core_type<tc>, window_params = [{transform_indices = @transform_0, window_bounds = array<i64: 24, 256>}, {pipeline_mode = #tpu.pipeline_mode<synchronous>, transform_indices = @transform_1, window_bounds = array<i64: 256, 256>}, {pipeline_mode = #tpu.pipeline_mode<synchronous>, transform_indices = @transform_2, window_bounds = array<i64: 1, 256>}, {pipeline_mode = #tpu.pipeline_mode<synchronous>, transform_indices = @transform_3, window_bounds = array<i64: 1, 256>}, {pipeline_mode = #tpu.pipeline_mode<synchronous>, transform_indices = @transform_4, window_bounds = array<i64: 1, 256>}, {pipeline_mode = #tpu.pipeline_mode<synchronous>, transform_indices = @transform_5, window_bounds = array<i64: 256, 128>}, {pipeline_mode = #tpu.pipeline_mode<synchronous>, transform_indices = @transform_6, window_bounds = array<i64: 1, 128>}, {transform_indices = @transform_7, window_bounds = array<i64: 24, 128>}]} {
    %c0 = arith.constant 0 : index
    %c0_0 = arith.constant 0 : index
    %0 = vector.load %arg1[%c0, %c0_0] : memref<24x256xf32, #tpu.memory_space<vmem>>, vector<24x256xf32>
    %c0_1 = arith.constant 0 : index
    %c0_2 = arith.constant 0 : index
    %1 = vector.load %arg2[%c0_1, %c0_2] : memref<256x256xf32, #tpu.memory_space<vmem>>, vector<256x256xf32>
    %cst = arith.constant dense<0.000000e+00> : vector<24x256xf32>
    %2 = tpu.matmul %0, %1, %cst {dimension_numbers = #tpu.dot_dimension_numbers<[1], [0], [0], [1], [0, 0, 1, 1], [], []>} : vector<24x256xf32>, vector<256x256xf32>, vector<24x256xf32> -> vector<24x256xf32>
    %c0_3 = arith.constant 0 : index
    %c0_4 = arith.constant 0 : index
    %3 = vector.load %arg3[%c0_3, %c0_4] : memref<1x256xf32, #tpu.memory_space<vmem>>, vector<1x256xf32>
    %4 = vector.broadcast %3 : vector<1x256xf32> to vector<24x256xf32>
    %5 = arith.addf %2, %4 : vector<24x256xf32>
    %cst_5 = arith.constant dense<0.000000e+00> : vector<24xf32>
    %6 = vector.multi_reduction <add>, %5, %cst_5 [1] : vector<24x256xf32> to vector<24xf32>
    %7 = vector.shape_cast %6 : vector<24xf32> to vector<24x1xf32>
    %cst_6 = arith.constant 3.906250e-03 : f32
    %8 = vector.broadcast %cst_6 : f32 to vector<24x1xf32>
    %9 = arith.mulf %7, %8 : vector<24x1xf32>
    %10 = vector.broadcast %9 : vector<24x1xf32> to vector<24x256xf32>
    %11 = arith.subf %5, %10 : vector<24x256xf32>
    %12 = arith.mulf %11, %11 : vector<24x256xf32>
    %cst_7 = arith.constant dense<0.000000e+00> : vector<24xf32>
    %13 = vector.multi_reduction <add>, %12, %cst_7 [1] : vector<24x256xf32> to vector<24xf32>
    %14 = vector.shape_cast %13 : vector<24xf32> to vector<24x1xf32>
    %cst_8 = arith.constant 3.906250e-03 : f32
    %15 = vector.broadcast %cst_8 : f32 to vector<24x1xf32>
    %16 = arith.mulf %14, %15 : vector<24x1xf32>
    %cst_9 = arith.constant 9.99999974E-6 : f32
    %17 = vector.broadcast %cst_9 : f32 to vector<24x1xf32>
    %18 = arith.addf %16, %17 : vector<24x1xf32>
    %19 = math.rsqrt %18 : vector<24x1xf32>
    %20 = vector.broadcast %19 : vector<24x1xf32> to vector<24x256xf32>
    %21 = arith.mulf %11, %20 : vector<24x256xf32>
    %c0_10 = arith.constant 0 : index
    %c0_11 = arith.constant 0 : index
    %22 = vector.load %arg4[%c0_10, %c0_11] : memref<1x256xf32, #tpu.memory_space<vmem>>, vector<1x256xf32>
    %23 = vector.broadcast %22 : vector<1x256xf32> to vector<24x256xf32>
    %24 = arith.mulf %21, %23 : vector<24x256xf32>
    %c0_12 = arith.constant 0 : index
    %c0_13 = arith.constant 0 : index
    %25 = vector.load %arg5[%c0_12, %c0_13] : memref<1x256xf32, #tpu.memory_space<vmem>>, vector<1x256xf32>
    %26 = vector.broadcast %25 : vector<1x256xf32> to vector<24x256xf32>
    %27 = arith.addf %24, %26 : vector<24x256xf32>
    %cst_14 = arith.constant 5.000000e-01 : f32
    %28 = vector.broadcast %cst_14 : f32 to vector<24x256xf32>
    %29 = arith.mulf %28, %27 : vector<24x256xf32>
    %cst_15 = arith.constant 0.707106769 : f32
    %30 = vector.broadcast %cst_15 : f32 to vector<24x256xf32>
    %31 = arith.mulf %27, %30 : vector<24x256xf32>
    %32 = math.erf %31 : vector<24x256xf32>
    %cst_16 = arith.constant 1.000000e+00 : f32
    %33 = vector.broadcast %cst_16 : f32 to vector<24x256xf32>
    %34 = arith.addf %33, %32 : vector<24x256xf32>
    %35 = arith.mulf %29, %34 : vector<24x256xf32>
    %c0_17 = arith.constant 0 : index
    %c0_18 = arith.constant 0 : index
    %36 = vector.load %arg6[%c0_17, %c0_18] : memref<256x128xf32, #tpu.memory_space<vmem>>, vector<256x128xf32>
    %cst_19 = arith.constant dense<0.000000e+00> : vector<24x128xf32>
    %37 = tpu.matmul %35, %36, %cst_19 {dimension_numbers = #tpu.dot_dimension_numbers<[1], [0], [0], [1], [0, 0, 1, 1], [], []>} : vector<24x256xf32>, vector<256x128xf32>, vector<24x128xf32> -> vector<24x128xf32>
    %c0_20 = arith.constant 0 : index
    %c0_21 = arith.constant 0 : index
    %38 = vector.load %arg7[%c0_20, %c0_21] : memref<1x128xf32, #tpu.memory_space<vmem>>, vector<1x128xf32>
    %39 = vector.broadcast %38 : vector<1x128xf32> to vector<24x128xf32>
    %40 = arith.addf %37, %39 : vector<24x128xf32>
    %c0_22 = arith.constant 0 : index
    %c0_23 = arith.constant 0 : index
    %41 = vector.load %arg8[%c0_22, %c0_23] : memref<24x128xf32, #tpu.memory_space<vmem>>, vector<24x128xf32>
    tpu.vector_store %arg8[%c0_22, %c0_23], %40 {strides = array<i32>} : memref<24x128xf32, #tpu.memory_space<vmem>>, vector<24x128xf32>,
    return
  }
  func.func @transform_0(%arg0: i32) -> (i32, i32) {
    %c0_i32 = arith.constant 0 : i32
    %c0_i32_0 = arith.constant 0 : i32
    return %arg0, %c0_i32 : i32, i32
  }
  func.func @transform_1(%arg0: i32) -> (i32, i32) {
    %c0_i32 = arith.constant 0 : i32
    %c0_i32_0 = arith.constant 0 : i32
    %c0_i32_1 = arith.constant 0 : i32
    return %c0_i32, %c0_i32_0 : i32, i32
  }
  func.func @transform_2(%arg0: i32) -> (i32, i32) {
    %c0_i32 = arith.constant 0 : i32
    %c0_i32_0 = arith.constant 0 : i32
    %c0_i32_1 = arith.constant 0 : i32
    return %c0_i32, %c0_i32_0 : i32, i32
  }
  func.func @transform_3(%arg0: i32) -> (i32, i32) {
    %c0_i32 = arith.constant 0 : i32
    %c0_i32_0 = arith.constant 0 : i32
    %c0_i32_1 = arith.constant 0 : i32
    return %c0_i32, %c0_i32_0 : i32, i32
  }
  func.func @transform_4(%arg0: i32) -> (i32, i32) {
    %c0_i32 = arith.constant 0 : i32
    %c0_i32_0 = arith.constant 0 : i32
    %c0_i32_1 = arith.constant 0 : i32
    return %c0_i32, %c0_i32_0 : i32, i32
  }
  func.func @transform_5(%arg0: i32) -> (i32, i32) {
    %c0_i32 = arith.constant 0 : i32
    %c0_i32_0 = arith.constant 0 : i32
    %c0_i32_1 = arith.constant 0 : i32
    return %c0_i32, %c0_i32_0 : i32, i32
  }
  func.func @transform_6(%arg0: i32) -> (i32, i32) {
    %c0_i32 = arith.constant 0 : i32
    %c0_i32_0 = arith.constant 0 : i32
    %c0_i32_1 = arith.constant 0 : i32
    return %c0_i32, %c0_i32_0 : i32, i32
  }
  func.func @transform_7(%arg0: i32) -> (i32, i32) {
    %c0_i32 = arith.constant 0 : i32
    %c0_i32_0 = arith.constant 0 : i32
    return %arg0, %c0_i32 : i32, i32
  }
}

module attributes {stable_mosaic.version = 11 : i64} {
  func.func @_mlc_kernel(%arg0: i32, %arg1: memref<24x256xf32, #tpu.memory_space<vmem>>, %arg2: memref<256x256xf32, #tpu.memory_space<vmem>>, %arg3: memref<1x256xf32, #tpu.memory_space<vmem>>, %arg4: memref<1x256xf32, #tpu.memory_space<vmem>>, %arg5: memref<1x256xf32, #tpu.memory_space<vmem>>, %arg6: memref<256x128xf32, #tpu.memory_space<vmem>>, %arg7: memref<1x128xf32, #tpu.memory_space<vmem>>, %arg8: memref<24x128xf32, #tpu.memory_space<vmem>>) attributes {dimension_semantics = [#tpu.dimension_semantics<parallel>], iteration_bounds = array<i64: 2>, scalar_prefetch = 0 : i64, scratch_operands = 0 : i64, tpu.core_type = #tpu.core_type<tc>, window_params = [{transform_indices = @transform_0, window_bounds = array<i64: 24, 256>}, {pipeline_mode = #tpu.pipeline_mode<synchronous>, transform_indices = @transform_1, window_bounds = array<i64: 256, 256>}, {pipeline_mode = #tpu.pipeline_mode<synchronous>, transform_indices = @transform_2, window_bounds = array<i64: 1, 256>}, {pipeline_mode = #tpu.pipeline_mode<synchronous>, transform_indices = @transform_3, window_bounds = array<i64: 1, 256>}, {pipeline_mode = #tpu.pipeline_mode<synchronous>, transform_indices = @transform_4, window_bounds = array<i64: 1, 256>}, {pipeline_mode = #tpu.pipeline_mode<synchronous>, transform_indices = @transform_5, window_bounds = array<i64: 256, 128>}, {pipeline_mode = #tpu.pipeline_mode<synchronous>, transform_indices = @transform_6, window_bounds = array<i64: 1, 128>}, {transform_indices = @transform_7, window_bounds = array<i64: 24, 128>}]} {
    %c0 = arith.constant 0 : index
    %c0_0 = arith.constant 0 : index
    %0 = vector.load %arg1[%c0, %c0_0] : memref<24x256xf32, #tpu.memory_space<vmem>>, vector<24x256xf32>
    %c0_1 = arith.constant 0 : index
    %c0_2 = arith.constant 0 : index
    %1 = vector.load %arg2[%c0_1, %c0_2] : memref<256x256xf32, #tpu.memory_space<vmem>>, vector<256x256xf32>
    %cst = arith.constant dense<0.000000e+00> : vector<24x256xf32>
    %2 = tpu.matmul %0, %1, %cst {dimension_numbers = #tpu.dot_dimension_numbers<[1], [0], [0], [1], [0, 0, 1, 1], [], []>} : vector<24x256xf32>, vector<256x256xf32>, vector<24x256xf32> -> vector<24x256xf32>
    %c0_3 = arith.constant 0 : index
    %c0_4 = arith.constant 0 : index
    %3 = vector.load %arg3[%c0_3, %c0_4] : memref<1x256xf32, #tpu.memory_space<vmem>>, vector<1x256xf32>
    %4 = vector.broadcast %3 : vector<1x256xf32> to vector<24x256xf32>
    %5 = arith.addf %2, %4 : vector<24x256xf32>
    %cst_5 = arith.constant dense<0.000000e+00> : vector<24xf32>
    %6 = vector.multi_reduction <add>, %5, %cst_5 [1] : vector<24x256xf32> to vector<24xf32>
    %7 = vector.shape_cast %6 : vector<24xf32> to vector<24x1xf32>
    %cst_6 = arith.constant 3.906250e-03 : f32
    %8 = vector.broadcast %cst_6 : f32 to vector<24x1xf32>
    %9 = arith.mulf %7, %8 : vector<24x1xf32>
    %10 = vector.broadcast %9 : vector<24x1xf32> to vector<24x256xf32>
    %11 = arith.subf %5, %10 : vector<24x256xf32>
    %12 = arith.mulf %11, %11 : vector<24x256xf32>
    %cst_7 = arith.constant dense<0.000000e+00> : vector<24xf32>
    %13 = vector.multi_reduction <add>, %12, %cst_7 [1] : vector<24x256xf32> to vector<24xf32>
    %14 = vector.shape_cast %13 : vector<24xf32> to vector<24x1xf32>
    %cst_8 = arith.constant 3.906250e-03 : f32
    %15 = vector.broadcast %cst_8 : f32 to vector<24x1xf32>
    %16 = arith.mulf %14, %15 : vector<24x1xf32>
    %cst_9 = arith.constant 9.99999974E-6 : f32
    %17 = vector.broadcast %cst_9 : f32 to vector<24x1xf32>
    %18 = arith.addf %16, %17 : vector<24x1xf32>
    %19 = math.rsqrt %18 : vector<24x1xf32>
    %20 = vector.broadcast %19 : vector<24x1xf32> to vector<24x256xf32>
    %21 = arith.mulf %11, %20 : vector<24x256xf32>
    %c0_10 = arith.constant 0 : index
    %c0_11 = arith.constant 0 : index
    %22 = vector.load %arg4[%c0_10, %c0_11] : memref<1x256xf32, #tpu.memory_space<vmem>>, vector<1x256xf32>
    %23 = vector.broadcast %22 : vector<1x256xf32> to vector<24x256xf32>
    %24 = arith.mulf %21, %23 : vector<24x256xf32>
    %c0_12 = arith.constant 0 : index
    %c0_13 = arith.constant 0 : index
    %25 = vector.load %arg5[%c0_12, %c0_13] : memref<1x256xf32, #tpu.memory_space<vmem>>, vector<1x256xf32>
    %26 = vector.broadcast %25 : vector<1x256xf32> to vector<24x256xf32>
    %27 = arith.addf %24, %26 : vector<24x256xf32>
    %cst_14 = arith.constant 5.000000e-01 : f32
    %28 = vector.broadcast %cst_14 : f32 to vector<24x256xf32>
    %29 = arith.mulf %28, %27 : vector<24x256xf32>
    %cst_15 = arith.constant 0.707106769 : f32
    %30 = vector.broadcast %cst_15 : f32 to vector<24x256xf32>
    %31 = arith.mulf %27, %30 : vector<24x256xf32>
    %32 = math.erf %31 : vector<24x256xf32>
    %cst_16 = arith.constant 1.000000e+00 : f32
    %33 = vector.broadcast %cst_16 : f32 to vector<24x256xf32>
    %34 = arith.addf %33, %32 : vector<24x256xf32>
    %35 = arith.mulf %29, %34 : vector<24x256xf32>
    %c0_17 = arith.constant 0 : index
    %c0_18 = arith.constant 0 : index
    %36 = vector.load %arg6[%c0_17, %c0_18] : memref<256x128xf32, #tpu.memory_space<vmem>>, vector<256x128xf32>
    %cst_19 = arith.constant dense<0.000000e+00> : vector<24x128xf32>
    %37 = tpu.matmul %35, %36, %cst_19 {dimension_numbers = #tpu.dot_dimension_numbers<[1], [0], [0], [1], [0, 0, 1, 1], [], []>} : vector<24x256xf32>, vector<256x128xf32>, vector<24x128xf32> -> vector<24x128xf32>
    %c0_20 = arith.constant 0 : index
    %c0_21 = arith.constant 0 : index
    %38 = vector.load %arg7[%c0_20, %c0_21] : memref<1x128xf32, #tpu.memory_space<vmem>>, vector<1x128xf32>
    %39 = vector.broadcast %38 : vector<1x128xf32> to vector<24x128xf32>
    %40 = arith.addf %37, %39 : vector<24x128xf32>
    %c0_22 = arith.constant 0 : index
    %c0_23 = arith.constant 0 : index
    %41 = vector.load %arg8[%c0_22, %c0_23] : memref<24x128xf32, #tpu.memory_space<vmem>>, vector<24x128xf32>
    tpu.vector_store %arg8[%c0_22, %c0_23], %40 {strides = array<i32>} : memref<24x128xf32, #tpu.memory_space<vmem>>, vector<24x128xf32>,
    return
  }
  func.func @transform_0(%arg0: i32) -> (i32, i32) {
    %c0_i32 = arith.constant 0 : i32
    %c0_i32_0 = arith.constant 0 : i32
    return %arg0, %c0_i32 : i32, i32
  }
  func.func @transform_1(%arg0: i32) -> (i32, i32) {
    %c0_i32 = arith.constant 0 : i32
    %c0_i32_0 = arith.constant 0 : i32
    %c0_i32_1 = arith.constant 0 : i32
    return %c0_i32, %c0_i32_0 : i32, i32
  }
  func.func @transform_2(%arg0: i32) -> (i32, i32) {
    %c0_i32 = arith.constant 0 : i32
    %c0_i32_0 = arith.constant 0 : i32
    %c0_i32_1 = arith.constant 0 : i32
    return %c0_i32, %c0_i32_0 : i32, i32
  }
  func.func @transform_3(%arg0: i32) -> (i32, i32) {
    %c0_i32 = arith.constant 0 : i32
    %c0_i32_0 = arith.constant 0 : i32
    %c0_i32_1 = arith.constant 0 : i32
    return %c0_i32, %c0_i32_0 : i32, i32
  }
  func.func @transform_4(%arg0: i32) -> (i32, i32) {
    %c0_i32 = arith.constant 0 : i32
    %c0_i32_0 = arith.constant 0 : i32
    %c0_i32_1 = arith.constant 0 : i32
    return %c0_i32, %c0_i32_0 : i32, i32
  }
  func.func @transform_5(%arg0: i32) -> (i32, i32) {
    %c0_i32 = arith.constant 0 : i32
    %c0_i32_0 = arith.constant 0 : i32
    %c0_i32_1 = arith.constant 0 : i32
    return %c0_i32, %c0_i32_0 : i32, i32
  }
  func.func @transform_6(%arg0: i32) -> (i32, i32) {
    %c0_i32 = arith.constant 0 : i32
    %c0_i32_0 = arith.constant 0 : i32
    %c0_i32_1 = arith.constant 0 : i32
    return %c0_i32, %c0_i32_0 : i32, i32
  }
  func.func @transform_7(%arg0: i32) -> (i32, i32) {
    %c0_i32 = arith.constant 0 : i32
    %c0_i32_0 = arith.constant 0 : i32
    return %arg0, %c0_i32 : i32, i32
  }
}

</mosaic_0001>

<llo_original>
// kernel: tpu_custom_call.1
$region0: #{tpu_custom_call.1}
  #allocation0 [shape = 'u32[]', space=smem, size = 0x4, offset = 0x4, fixed_abs, tag = 'smem constant byte address 0x4 - core index']
  #allocation1 [shape = 'u32[72,128]{1,0:T(1,128)}', space=vmem, size = 0x9000, scoped, tag = 'internal scratch']
  %s0 = inlined_call_operand.hbm [shape: f32[48,256], index: 0, kind: input, shape index: {}]
  %s1 = inlined_call_operand.hbm [shape: f32[256,256], index: 1, kind: input, shape index: {}]
  %s2 = inlined_call_operand.hbm [shape: f32[1,256], index: 2, kind: input, shape index: {}]
  %s3 = inlined_call_operand.vmem [shape: f32[1,256], index: 3, kind: input, shape index: {}]
  %s4 = inlined_call_operand.hbm [shape: f32[1,256], index: 4, kind: input, shape index: {}]
  %s5 = inlined_call_operand.hbm [shape: f32[256,128], index: 5, kind: input, shape index: {}]
  %s6 = inlined_call_operand.vmem [shape: f32[1,128], index: 6, kind: input, shape index: {}]
  %s7 = inlined_call_operand.hbm [shape: f32[48,128], index: 7, kind: output, shape index: {}]
  %s8 = sld [smem:[#allocation0]]
  $region81: #{tpu_custom_call.1} parent=0
    _
  %s10 = ssub.s32 1, %s8
  %s11 = scalar_select 0, %s10, %s8
  $region1: #{tpu_custom_call.1} parent=0
    #allocation2 [shape = 'u8[49152]{0}', space=vmem, size = 0xc000, scoped, tag = 'input window, operand 0']
    #allocation3 [shape = 's32[2]{0}', space=sflag, size = 0x8, scoped, tag = 'scoped memory for tpu_custom_call.1']
    #allocation4 [shape = 's32[2]{0}', space=sflag, size = 0x8, scoped, tag = 'scoped memory for tpu_custom_call.1']
    #allocation5 [shape = 'u8[262144]{0}', space=vmem, size = 0x40000, scoped, tag = 'input window, operand 1, single buffered']
    #allocation6 [shape = 's32[1]{0}', space=sflag, size = 0x4, scoped, tag = 'scoped memory for tpu_custom_call.1']
    #allocation7 [shape = 'u8[1024]{0}', space=vmem, size = 0x400, scoped, tag = 'input window, operand 2, single buffered']
    #allocation8 [shape = 'u8[1024]{0}', space=vmem, size = 0x400, scoped, tag = 'input window, operand 4, single buffered']
    #allocation9 [shape = 's32[1]{0}', space=sflag, size = 0x4, scoped, tag = 'scoped memory for tpu_custom_call.1']
    #allocation10 [shape = 'u8[131072]{0}', space=vmem, size = 0x20000, scoped, tag = 'input window, operand 5, single buffered']
    #allocation11 [shape = 'u8[24576]{0}', space=vmem, size = 0x6000, scoped, tag = 'output window, operand 0']
    %12 = vsyncpa [#allocation3], 0
    %s13 = scalar_lea.sflag [#allocation3], 1
    %14 = vsyncpa %s13, 0
    %15 = vsyncpa [#allocation6], 0
    %16 = vsyncpa [#allocation9], 0
    %17 = vsyncpa [#allocation4], 0
    %s18 = scalar_lea.sflag [#allocation4], 1
    %19 = vsyncpa %s18, 0
    loop: start=0, step=1, limit=4
    $region2: #{tpu_custom_call.1} parent=1 // loop_pre_header
      _
    $region3: #{tpu_custom_call.1} parent=1 // loop_header
      %s21 = sphi 0, %s25
      %p22 = scmp.ge.s32.totalorder %s21, 4
      %s31 = sphi 0, %s33
      %s34 = sphi 0, %s31
      %s35 = sphi 0, %s34
      %s51 = sphi 0, %s35
      %s55 = sphi 0, %s55
      %s57 = sphi 0, %s55
      %s58 = sphi 0, %s57
      %s72 = sphi 0, %s58
      %s76 = sphi 0, %s76
      %s78 = sphi 0, %s76
      %s79 = sphi 0, %s78
      %s93 = sphi 0, %s79
      %s97 = sphi 0, %s97
      %s99 = sphi 0, %s97
      %s100 = sphi 0, %s99
      %s114 = sphi 0, %s100
      %s118 = sphi 0, %s118
      %s120 = sphi 0, %s118
      %s121 = sphi 0, %s120
      %s135 = sphi 0, %s121
      %s139 = sphi 0, %s139
      %s141 = sphi 0, %s139
      %s142 = sphi 0, %s141
      %s156 = sphi 0, %s142
      %s160 = sphi 0, %s160
      %s162 = sphi 0, %s160
      %s163 = sphi 0, %s162
      %s177 = sphi 0, %s163
      %s183 = sphi 0, %s185
      %s186 = sphi 0, %s183
      %s187 = sphi 0, %s186
      %s203 = sphi 0, %s187
    $region4: #{tpu_custom_call.1} parent=1 // loop_header_branch
      %24 = sbr.rel (%p22) target = $region8
    $region5: #{tpu_custom_call.1} parent=1 // loop_body
      %s26 = ssub.s32 %s21, 1
      %s27 = ssub.s32 %s21, 2
      %s28 = sadd.s32 %s21, 1
      %s29 = ssub.s32 %s21, %s28
      %p30 = scmp.eq.s32.totalorder %s29, 0
      %s32 = sadd.s32 %s31, 1
      %s33 = scalar_select %p30, %s31, %s32
      %p36 = pneg %p30
      %p37 = scmp.eq.s32.totalorder %s21, 1
      %p38 = por %p36, %p37
      %p39 = scmp.ne.s32.totalorder %s31, %s34
      %p40 = scmp.eq.s32.totalorder %s21, 0
      %p41 = por %p39, %p40
      %p42 = scmp.ne.s32.totalorder %s31, %s34
      %p43 = scmp.eq.s32.totalorder %s26, 1
      %p44 = por %p42, %p43
      %p45 = scmp.ne.s32.totalorder %s34, %s35
      %p46 = scmp.eq.s32.totalorder %s26, 0
      %p47 = por %p45, %p46
      %p48 = scmp.ne.s32.totalorder %s34, %s35
      %p49 = scmp.eq.s32.totalorder %s27, 1
      %p50 = por %p48, %p49
      %p52 = scmp.ne.s32.totalorder %s35, %s51
      %p53 = scmp.eq.s32.totalorder %s27, 0
      %p54 = por %p52, %p53
      %s56 = sadd.s32 %s55, 1
      %p59 = scmp.eq.s32.totalorder %s21, 1
      %p60 = scmp.ne.s32.totalorder %s55, %s57
      %p61 = scmp.eq.s32.totalorder %s21, 0
      %p62 = por %p60, %p61
      %p63 = scmp.ne.s32.totalorder %s55, %s57
      %p64 = scmp.eq.s32.totalorder %s26, 1
      %p65 = por %p63, %p64
      %p66 = scmp.ne.s32.totalorder %s57, %s58
      %p67 = scmp.eq.s32.totalorder %s26, 0
      %p68 = por %p66, %p67
      %p69 = scmp.ne.s32.totalorder %s57, %s58
      %p70 = scmp.eq.s32.totalorder %s27, 1
      %p71 = por %p69, %p70
      %p73 = scmp.ne.s32.totalorder %s58, %s72
      %p74 = scmp.eq.s32.totalorder %s27, 0
      %p75 = por %p73, %p74
      %s77 = sadd.s32 %s76, 1
      %p80 = scmp.eq.s32.totalorder %s21, 1
      %p81 = scmp.ne.s32.totalorder %s76, %s78
      %p82 = scmp.eq.s32.totalorder %s21, 0
      %p83 = por %p81, %p82
      %p84 = scmp.ne.s32.totalorder %s76, %s78
      %p85 = scmp.eq.s32.totalorder %s26, 1
      %p86 = por %p84, %p85
      %p87 = scmp.ne.s32.totalorder %s78, %s79
      %p88 = scmp.eq.s32.totalorder %s26, 0
      %p89 = por %p87, %p88
      %p90 = scmp.ne.s32.totalorder %s78, %s79
      %p91 = scmp.eq.s32.totalorder %s27, 1
      %p92 = por %p90, %p91
      %p94 = scmp.ne.s32.totalorder %s79, %s93
      %p95 = scmp.eq.s32.totalorder %s27, 0
      %p96 = por %p94, %p95
      %s98 = sadd.s32 %s97, 1
      %p101 = scmp.eq.s32.totalorder %s21, 1
      %p102 = scmp.ne.s32.totalorder %s97, %s99
      %p103 = scmp.eq.s32.totalorder %s21, 0
      %p104 = por %p102, %p103
      %p105 = scmp.ne.s32.totalorder %s97, %s99
      %p106 = scmp.eq.s32.totalorder %s26, 1
      %p107 = por %p105, %p106
      %p108 = scmp.ne.s32.totalorder %s99, %s100
      %p109 = scmp.eq.s32.totalorder %s26, 0
      %p110 = por %p108, %p109
      %p111 = scmp.ne.s32.totalorder %s99, %s100
      %p112 = scmp.eq.s32.totalorder %s27, 1
      %p113 = por %p111, %p112
      %p115 = scmp.ne.s32.totalorder %s100, %s114
      %p116 = scmp.eq.s32.totalorder %s27, 0
      %p117 = por %p115, %p116
      %s119 = sadd.s32 %s118, 1
      %p122 = scmp.eq.s32.totalorder %s21, 1
      %p123 = scmp.ne.s32.totalorder %s118, %s120
      %p124 = scmp.eq.s32.totalorder %s21, 0
      %p125 = por %p123, %p124
      %p126 = scmp.ne.s32.totalorder %s118, %s120
      %p127 = scmp.eq.s32.totalorder %s26, 1
      %p128 = por %p126, %p127
      %p129 = scmp.ne.s32.totalorder %s120, %s121
      %p130 = scmp.eq.s32.totalorder %s26, 0
      %p131 = por %p129, %p130
      %p132 = scmp.ne.s32.totalorder %s120, %s121
      %p133 = scmp.eq.s32.totalorder %s27, 1
      %p134 = por %p132, %p133
      %p136 = scmp.ne.s32.totalorder %s121, %s135
      %p137 = scmp.eq.s32.totalorder %s27, 0
      %p138 = por %p136, %p137
      %s140 = sadd.s32 %s139, 1
      %p143 = scmp.eq.s32.totalorder %s21, 1
      %p144 = scmp.ne.s32.totalorder %s139, %s141
      %p145 = scmp.eq.s32.totalorder %s21, 0
      %p146 = por %p144, %p145
      %p147 = scmp.ne.s32.totalorder %s139, %s141
      %p148 = scmp.eq.s32.totalorder %s26, 1
      %p149 = por %p147, %p148
      %p150 = scmp.ne.s32.totalorder %s141, %s142
      %p151 = scmp.eq.s32.totalorder %s26, 0
      %p152 = por %p150, %p151
      %p153 = scmp.ne.s32.totalorder %s141, %s142
      %p154 = scmp.eq.s32.totalorder %s27, 1
      %p155 = por %p153, %p154
      %p157 = scmp.ne.s32.totalorder %s142, %s156
      %p158 = scmp.eq.s32.totalorder %s27, 0
      %p159 = por %p157, %p158
      %s161 = sadd.s32 %s160, 1
      %p164 = scmp.eq.s32.totalorder %s21, 1
      %p165 = scmp.ne.s32.totalorder %s160, %s162
      %p166 = scmp.eq.s32.totalorder %s21, 0
      %p167 = por %p165, %p166
      %p168 = scmp.ne.s32.totalorder %s160, %s162
      %p169 = scmp.eq.s32.totalorder %s26, 1
      %p170 = por %p168, %p169
      %p171 = scmp.ne.s32.totalorder %s162, %s163
      %p172 = scmp.eq.s32.totalorder %s26, 0
      %p173 = por %p171, %p172
      %p174 = scmp.ne.s32.totalorder %s162, %s163
      %p175 = scmp.eq.s32.totalorder %s27, 1
      %p176 = por %p174, %p175
      %p178 = scmp.ne.s32.totalorder %s163, %s177
      %p179 = scmp.eq.s32.totalorder %s27, 0
      %p180 = por %p178, %p179
      %s181 = ssub.s32 %s21, %s28
      %p182 = scmp.eq.s32.totalorder %s181, 0
      %s184 = sadd.s32 %s183, 1
      %s185 = scalar_select %p182, %s183, %s184
      %p188 = pneg %p182
      %p189 = scmp.eq.s32.totalorder %s21, 1
      %p190 = por %p188, %p189
      %p191 = scmp.ne.s32.totalorder %s183, %s186
      %p192 = scmp.eq.s32.totalorder %s21, 0
      %p193 = por %p191, %p192
      %p194 = scmp.ne.s32.totalorder %s183, %s186
      %p195 = scmp.eq.s32.totalorder %s26, 1
      %p196 = por %p194, %p195
      %p197 = scmp.ne.s32.totalorder %s186, %s187
      %p198 = scmp.eq.s32.totalorder %s26, 0
      %p199 = por %p197, %p198
      %p200 = scmp.ne.s32.totalorder %s186, %s187
      %p201 = scmp.eq.s32.totalorder %s27, 1
      %p202 = por %p200, %p201
      %p204 = scmp.ne.s32.totalorder %s187, %s203
      %p205 = scmp.eq.s32.totalorder %s27, 0
      %p206 = por %p204, %p205
      %p207 = scmp.le.s32.totalorder 1, %s21
      %p208 = scmp.lt.s32.totalorder %s21, 3
      %p209 = pnand %p207, %p208
      %p210 = pneg %p209
      // Predicated region
      $region9: #{tpu_custom_call.1} parent=5 // pred_check
        _
      $region10: #{tpu_custom_call.1} parent=5 // pred_check_branch
        %212 = sbr.rel (%p209) target = $region12
      $region11: #{tpu_custom_call.1} parent=5 // pred_region
        %s213 = ssub.s32 %s21, 1
        // Predicated region
        $region13: #{tpu_custom_call.1} parent=11 // pred_check
          %p214 = pneg %p68
        $region14: #{tpu_custom_call.1} parent=11 // pred_check_branch
          %216 = sbr.rel (%p214) target = $region16
        $region15: #{tpu_custom_call.1} parent=11 // pred_region
          %218 = vsyncadd [#allocation6], 0
          %s219 = sshll.u32 %s1, 4
          %s220 = int_to_ptr.hbm [resolvable:$true] %s219
          %s221 = sshll.u32 [#allocation5], 4
          %s222 = int_to_ptr.vmem [resolvable:$true] %s221
          %227 = dma.hbm_to_vmem [thread:$0]  %s220, 8192, %s222, [#allocation6], 256, 256, 16
        $region16: #{tpu_custom_call.1} parent=11 // pred_fallthru
          _
        // Predicated region
        $region17: #{tpu_custom_call.1} parent=11 // pred_check
          %p228 = pneg %p89
        $region18: #{tpu_custom_call.1} parent=11 // pred_check_branch
          %230 = sbr.rel (%p228) target = $region20
        $region19: #{tpu_custom_call.1} parent=11 // pred_region
          %232 = vsyncadd [#allocation6], 0
          %s234 = sshll.u32 %s2, 4
          %s235 = int_to_ptr.hbm [resolvable:$true] %s234
          %s236 = sshll.u32 [#allocation7], 4
          %s237 = int_to_ptr.vmem [resolvable:$true] %s236
          %239 = dma.hbm_to_vmem [thread:$0]  %s235, 32, %s237, [#allocation6]
        $region20: #{tpu_custom_call.1} parent=11 // pred_fallthru
          _
        // Predicated region
        $region21: #{tpu_custom_call.1} parent=11 // pred_check
          %p240 = pneg %p110
        $region22: #{tpu_custom_call.1} parent=11 // pred_check_branch
          %242 = sbr.rel (%p240) target = $region24
        $region23: #{tpu_custom_call.1} parent=11 // pred_region
          _
        $region24: #{tpu_custom_call.1} parent=11 // pred_fallthru
          _
        // Predicated region
        $region25: #{tpu_custom_call.1} parent=11 // pred_check
          %p243 = pneg %p131
        $region26: #{tpu_custom_call.1} parent=11 // pred_check_branch
          %245 = sbr.rel (%p243) target = $region28
        $region27: #{tpu_custom_call.1} parent=11 // pred_region
          %247 = vsyncadd [#allocation9], 0
          %s249 = sshll.u32 %s4, 4
          %s250 = int_to_ptr.hbm [resolvable:$true] %s249
          %s251 = sshll.u32 [#allocation8], 4
          %s252 = int_to_ptr.vmem [resolvable:$true] %s251
          %254 = dma.hbm_to_vmem [thread:$0]  %s250, 32, %s252, [#allocation9]
        $region28: #{tpu_custom_call.1} parent=11 // pred_fallthru
          _
        // Predicated region
        $region29: #{tpu_custom_call.1} parent=11 // pred_check
          %p255 = pneg %p152
        $region30: #{tpu_custom_call.1} parent=11 // pred_check_branch
          %257 = sbr.rel (%p255) target = $region32
        $region31: #{tpu_custom_call.1} parent=11 // pred_region
          %259 = vsyncadd [#allocation9], 0
          %s260 = sshll.u32 %s5, 4
          %s261 = int_to_ptr.hbm [resolvable:$true] %s260
          %s262 = sshll.u32 [#allocation10], 4
          %s263 = int_to_ptr.vmem [resolvable:$true] %s262
          %268 = dma.hbm_to_vmem [thread:$0]  %s261, 4096, %s263, [#allocation9], 128, 128, 8
        $region32: #{tpu_custom_call.1} parent=11 // pred_fallthru
          _
        // Predicated region
        $region33: #{tpu_custom_call.1} parent=11 // pred_check
          %p269 = pneg %p173
        $region34: #{tpu_custom_call.1} parent=11 // pred_check_branch
          %271 = sbr.rel (%p269) target = $region36
        $region35: #{tpu_custom_call.1} parent=11 // pred_region
          _
        $region36: #{tpu_custom_call.1} parent=11 // pred_fallthru
          _
      $region12: #{tpu_custom_call.1} parent=5 // pred_fallthru
        _
      %p272 = scmp.lt.s32.totalorder %s21, 2
      // Predicated region
      $region37: #{tpu_custom_call.1} parent=5 // pred_check
        %p273 = pneg %p272
      $region38: #{tpu_custom_call.1} parent=5 // pred_check_branch
        %275 = sbr.rel (%p273) target = $region40
      $region39: #{tpu_custom_call.1} parent=5 // pred_region
        // Predicated region
        $region41: #{tpu_custom_call.1} parent=39 // pred_check
          %p276 = pneg %p41
        $region42: #{tpu_custom_call.1} parent=39 // pred_check_branch
          %278 = sbr.rel (%p276) target = $region44
        $region43: #{tpu_custom_call.1} parent=39 // pred_region
          %s279 = sand.u32 %s31, 1
          %s280 = scalar_lea.sflag [#allocation3], %s279
          %s281 = sand.u32 %s31, 1
          %s282 = smul.addr %s281, 48
          %s283 = scalar_lea.vmem [#allocation2], %s282
          %s284 = smul.u32 3, %s21
          %286 = vsyncadd %s280, 0
          %s287 = smul.addr %s284, 2
          %s288 = smul.addr %s287, 8
          %s289 = scalar_lea.hbm %s0, %s288
          %s290 = sshll.u32 %s289, 4
          %s291 = int_to_ptr.hbm [resolvable:$true] %s290
          %s292 = sshll.u32 %s283, 4
          %s293 = int_to_ptr.vmem [resolvable:$true] %s292
          %298 = dma.hbm_to_vmem [thread:$0]  %s291, 768, %s293, %s280, 256, 256, 16
        $region44: #{tpu_custom_call.1} parent=39 // pred_fallthru
          _
      $region40: #{tpu_custom_call.1} parent=5 // pred_fallthru
        _
      %p299 = scmp.le.s32.totalorder 1, %s21
      %p300 = scmp.lt.s32.totalorder %s21, 3
      %p301 = pnand %p299, %p300
      %p302 = pneg %p301
      // Predicated region
      $region45: #{tpu_custom_call.1} parent=5 // pred_check
        _
      $region46: #{tpu_custom_call.1} parent=5 // pred_check_branch
        %304 = sbr.rel (%p301) target = $region48
      $region47: #{tpu_custom_call.1} parent=5 // pred_region
        %s305 = ssub.s32 %s21, 1
        %s306 = sand.u32 %s34, 1
        %s307 = scalar_lea.sflag [#allocation3], %s306
        %s308 = sand.u32 %s34, 1
        %s309 = smul.addr %s308, 48
        %s310 = scalar_lea.vmem [#allocation2], %s309
        // Predicated region
        $region49: #{tpu_custom_call.1} parent=47 // pred_check
          %p311 = pneg %p47
        $region50: #{tpu_custom_call.1} parent=47 // pred_check_branch
          %313 = sbr.rel (%p311) target = $region52
        $region51: #{tpu_custom_call.1} parent=47 // pred_region
          %315 = dma.done %s307, 768
        $region52: #{tpu_custom_call.1} parent=47 // pred_fallthru
          _
        // Predicated region
        $region53: #{tpu_custom_call.1} parent=47 // pred_check
          %p316 = pneg %p68
        $region54: #{tpu_custom_call.1} parent=47 // pred_check_branch
          %318 = sbr.rel (%p316) target = $region56
        $region55: #{tpu_custom_call.1} parent=47 // pred_region
          %320 = dma.done [#allocation6], 8192
        $region56: #{tpu_custom_call.1} parent=47 // pred_fallthru
          _
        // Predicated region
        $region57: #{tpu_custom_call.1} parent=47 // pred_check
          %p321 = pneg %p89
        $region58: #{tpu_custom_call.1} parent=47 // pred_check_branch
          %323 = sbr.rel (%p321) target = $region60
        $region59: #{tpu_custom_call.1} parent=47 // pred_region
          %325 = dma.done [#allocation6], 32
        $region60: #{tpu_custom_call.1} parent=47 // pred_fallthru
          _
        // Predicated region
        $region61: #{tpu_custom_call.1} parent=47 // pred_check
          %p326 = pneg %p131
        $region62: #{tpu_custom_call.1} parent=47 // pred_check_branch
          %328 = sbr.rel (%p326) target = $region64
        $region63: #{tpu_custom_call.1} parent=47 // pred_region
          %330 = dma.done [#allocation9], 32
        $region64: #{tpu_custom_call.1} parent=47 // pred_fallthru
          _
        // Predicated region
        $region65: #{tpu_custom_call.1} parent=47 // pred_check
          %p331 = pneg %p152
        $region66: #{tpu_custom_call.1} parent=47 // pred_check_branch
          %333 = sbr.rel (%p331) target = $region68
        $region67: #{tpu_custom_call.1} parent=47 // pred_region
          %335 = dma.done [#allocation9], 4096
        $region68: #{tpu_custom_call.1} parent=47 // pred_fallthru
          _
        %s336 = sand.u32 %s34, 1
        %s337 = scalar_lea.sflag [#allocation3], %s336
        %s338 = sand.u32 %s34, 1
        %s339 = smul.addr %s338, 48
        %s340 = scalar_lea.vmem [#allocation2], %s339
        %p341 = pneg %p47
        %p342 = pneg %p44
        %p343 = pneg %p68
        %p344 = pneg %p65
        %p345 = pneg %p89
        %p346 = pneg %p86
        %p347 = pneg %p110
        %p348 = pneg %p107
        %p349 = pneg %p131
        %p350 = pneg %p128
        %p351 = pneg %p152
        %p352 = pneg %p149
        %p353 = pneg %p173
        %p354 = pneg %p170
        %p355 = pneg %p199
        %p356 = pneg %p196
        %s357 = sand.u32 %s186, 1
        %s358 = scalar_lea.sflag [#allocation4], %s357
        %s359 = sand.u32 %s186, 1
        %s360 = smul.addr %s359, 24
        %s361 = scalar_lea.vmem [#allocation11], %s360
        %s362 = smul.u32 3, %s26
        %s363 = smul.u32 3, %s26
        %v364 = vld [vmem:[%s310] sm:$0xff]
        %v365 = vld [vmem:[%s310 + $0x8] sm:$0xff]
        %v366 = vld [vmem:[%s310 + $0x10] sm:$0xff]
        %v367 = vld [vmem:[%s310 + $0x18] sm:$0xff]
        %v368 = vld [vmem:[%s310 + $0x20] sm:$0xff]
        %v369 = vld [vmem:[%s310 + $0x28] sm:$0xff]
        %v370 = vld [vmem:[#allocation5] sm:$0xff]
        %v371 = vld [vmem:[#allocation5 + $0x8] sm:$0xff]
        %v372 = vld [vmem:[#allocation5 + $0x10] sm:$0xff]
        %v373 = vld [vmem:[#allocation5 + $0x18] sm:$0xff]
        %v374 = vld [vmem:[#allocation5 + $0x20] sm:$0xff]
        %v375 = vld [vmem:[#allocation5 + $0x28] sm:$0xff]
        %v376 = vld [vmem:[#allocation5 + $0x30] sm:$0xff]
        %v377 = vld [vmem:[#allocation5 + $0x38] sm:$0xff]
        %v378 = vld [vmem:[#allocation5 + $0x40] sm:$0xff]
        %v379 = vld [vmem:[#allocation5 + $0x48] sm:$0xff]
        %v380 = vld [vmem:[#allocation5 + $0x50] sm:$0xff]
        %v381 = vld [vmem:[#allocation5 + $0x58] sm:$0xff]
        %v382 = vld [vmem:[#allocation5 + $0x60] sm:$0xff]
        %v383 = vld [vmem:[#allocation5 + $0x68] sm:$0xff]
        %v384 = vld [vmem:[#allocation5 + $0x70] sm:$0xff]
        %v385 = vld [vmem:[#allocation5 + $0x78] sm:$0xff]
        %v386 = vld [vmem:[#allocation5 + $0x80] sm:$0xff]
        %v387 = vld [vmem:[#allocation5 + $0x88] sm:$0xff]
        %v388 = vld [vmem:[#allocation5 + $0x90] sm:$0xff]
        %v389 = vld [vmem:[#allocation5 + $0x98] sm:$0xff]
        %v390 = vld [vmem:[#allocation5 + $0xa0] sm:$0xff]
        %v391 = vld [vmem:[#allocation5 + $0xa8] sm:$0xff]
        %v392 = vld [vmem:[#allocation5 + $0xb0] sm:$0xff]
        %v393 = vld [vmem:[#allocation5 + $0xb8] sm:$0xff]
        %v394 = vld [vmem:[#allocation5 + $0xc0] sm:$0xff]
        %v395 = vld [vmem:[#allocation5 + $0xc8] sm:$0xff]
        %v396 = vld [vmem:[#allocation5 + $0xd0] sm:$0xff]
        %v397 = vld [vmem:[#allocation5 + $0xd8] sm:$0xff]
        %v398 = vld [vmem:[#allocation5 + $0xe0] sm:$0xff]
        %v399 = vld [vmem:[#allocation5 + $0xe8] sm:$0xff]
        %v400 = vld [vmem:[#allocation5 + $0xf0] sm:$0xff]
        %v401 = vld [vmem:[#allocation5 + $0xf8] sm:$0xff]
        %v402 = vld [vmem:[#allocation5 + $0x100] sm:$0xff]
        %v403 = vld [vmem:[#allocation5 + $0x108] sm:$0xff]
        %v404 = vld [vmem:[#allocation5 + $0x110] sm:$0xff]
        %v405 = vld [vmem:[#allocation5 + $0x118] sm:$0xff]
        %v406 = vld [vmem:[#allocation5 + $0x120] sm:$0xff]
        %v407 = vld [vmem:[#allocation5 + $0x128] sm:$0xff]
        %v408 = vld [vmem:[#allocation5 + $0x130] sm:$0xff]
        %v409 = vld [vmem:[#allocation5 + $0x138] sm:$0xff]
        %v410 = vld [vmem:[#allocation5 + $0x140] sm:$0xff]
        %v411 = vld [vmem:[#allocation5 + $0x148] sm:$0xff]
        %v412 = vld [vmem:[#allocation5 + $0x150] sm:$0xff]
        %v413 = vld [vmem:[#allocation5 + $0x158] sm:$0xff]
        %v414 = vld [vmem:[#allocation5 + $0x160] sm:$0xff]
        %v415 = vld [vmem:[#allocation5 + $0x168] sm:$0xff]
        %v416 = vld [vmem:[#allocation5 + $0x170] sm:$0xff]
        %v417 = vld [vmem:[#allocation5 + $0x178] sm:$0xff]
        %v418 = vld [vmem:[#allocation5 + $0x180] sm:$0xff]
        %v419 = vld [vmem:[#allocation5 + $0x188] sm:$0xff]
        %v420 = vld [vmem:[#allocation5 + $0x190] sm:$0xff]
        %v421 = vld [vmem:[#allocation5 + $0x198] sm:$0xff]
        %v422 = vld [vmem:[#allocation5 + $0x1a0] sm:$0xff]
        %v423 = vld [vmem:[#allocation5 + $0x1a8] sm:$0xff]
        %v424 = vld [vmem:[#allocation5 + $0x1b0] sm:$0xff]
        %v425 = vld [vmem:[#allocation5 + $0x1b8] sm:$0xff]
        %v426 = vld [vmem:[#allocation5 + $0x1c0] sm:$0xff]
        %v427 = vld [vmem:[#allocation5 + $0x1c8] sm:$0xff]
        %v428 = vld [vmem:[#allocation5 + $0x1d0] sm:$0xff]
        %v429 = vld [vmem:[#allocation5 + $0x1d8] sm:$0xff]
        %v430 = vld [vmem:[#allocation5 + $0x1e0] sm:$0xff]
        %v431 = vld [vmem:[#allocation5 + $0x1e8] sm:$0xff]
        %v432 = vld [vmem:[#allocation5 + $0x1f0] sm:$0xff]
        %v433 = vld [vmem:[#allocation5 + $0x1f8] sm:$0xff]
        %v434 = vld [vmem:[#allocation7] sm:$0x3]
        %v436 = vperm.slane %v434, 0
        %v437 = vperm.slane %v434, 1
        %440 = vmatpush.msra.mxu0 %v400
        %441 = vmatpush.msra.mxu0 %v398
        %442 = vmatpush.msra.mxu0 %v396
        %443 = vmatpush.msra.mxu0 %v394
        %444 = vmatpush.msra.mxu0 %v392
        %445 = vmatpush.msra.mxu0 %v390
        %446 = vmatpush.msra.mxu0 %v388
        %447 = vmatpush.msra.mxu0 %v386
        %448 = vmatpush.msra.mxu0 %v384
        %449 = vmatpush.msra.mxu0 %v382
        %450 = vmatpush.msra.mxu0 %v380
        %451 = vmatpush.msra.mxu0 %v378
        %452 = vmatpush.msra.mxu0 %v376
        %453 = vmatpush.msra.mxu0 %v374
        %454 = vmatpush.msra.mxu0 %v372
        %455 = vmatpush.msra.mxu0 %v370
        %456 = vmatmul.f32.gmra.mxu0 %v364
        %v457 = vpop.f32.mrf.mxu0
        %v458 = vadd.f32 %v436, %v457
        %459 = vmatmul.f32.gmra.mxu0 %v366
        %v460 = vpop.f32.mrf.mxu0
        %v461 = vadd.f32 %v436, %v460
        %462 = vmatmul.f32.gmra.mxu0 %v368
        %v463 = vpop.f32.mrf.mxu0
        %v464 = vadd.f32 %v436, %v463
        %465 = vdwg.mxu0
        %466 = vmatpush.msra.mxu0 %v432
        %467 = vmatpush.msra.mxu0 %v430
        %468 = vmatpush.msra.mxu0 %v428
        %469 = vmatpush.msra.mxu0 %v426
        %470 = vmatpush.msra.mxu0 %v424
        %471 = vmatpush.msra.mxu0 %v422
        %472 = vmatpush.msra.mxu0 %v420
        %473 = vmatpush.msra.mxu0 %v418
        %474 = vmatpush.msra.mxu0 %v416
        %475 = vmatpush.msra.mxu0 %v414
        %476 = vmatpush.msra.mxu0 %v412
        %477 = vmatpush.msra.mxu0 %v410
        %478 = vmatpush.msra.mxu0 %v408
        %479 = vmatpush.msra.mxu0 %v406
        %480 = vmatpush.msra.mxu0 %v404
        %481 = vmatpush.msra.mxu0 %v402
        %482 = vmatmul.f32.gmra.mxu0 %v365
        %v483 = vpop.f32.mrf.mxu0
        %v484 = vadd.f32 %v458, %v483
        %485 = vmatmul.f32.gmra.mxu0 %v367
        %v486 = vpop.f32.mrf.mxu0
        %v487 = vadd.f32 %v461, %v486
        %488 = vmatmul.f32.gmra.mxu0 %v369
        %v489 = vpop.f32.mrf.mxu0
        %v490 = vadd.f32 %v464, %v489
        %491 = vdwg.mxu0
        %492 = vmatpush.msra.mxu0 %v401
        %493 = vmatpush.msra.mxu0 %v399
        %494 = vmatpush.msra.mxu0 %v397
        %495 = vmatpush.msra.mxu0 %v395
        %496 = vmatpush.msra.mxu0 %v393
        %497 = vmatpush.msra.mxu0 %v391
        %498 = vmatpush.msra.mxu0 %v389
        %499 = vmatpush.msra.mxu0 %v387
        %500 = vmatpush.msra.mxu0 %v385
        %501 = vmatpush.msra.mxu0 %v383
        %502 = vmatpush.msra.mxu0 %v381
        %503 = vmatpush.msra.mxu0 %v379
        %504 = vmatpush.msra.mxu0 %v377
        %505 = vmatpush.msra.mxu0 %v375
        %506 = vmatpush.msra.mxu0 %v373
        %507 = vmatpush.msra.mxu0 %v371
        %508 = vmatmul.f32.gmra.mxu0 %v364
        %v509 = vpop.f32.mrf.mxu0
        %v510 = vadd.f32 %v437, %v509
        %511 = vmatmul.f32.gmra.mxu0 %v366
        %v512 = vpop.f32.mrf.mxu0
        %v513 = vadd.f32 %v437, %v512
        %514 = vmatmul.f32.gmra.mxu0 %v368
        %v515 = vpop.f32.mrf.mxu0
        %v516 = vadd.f32 %v437, %v515
        %517 = vdwg.mxu0
        %518 = vmatpush.msra.mxu0 %v433
        %519 = vmatpush.msra.mxu0 %v431
        %520 = vmatpush.msra.mxu0 %v429
        %521 = vmatpush.msra.mxu0 %v427
        %522 = vmatpush.msra.mxu0 %v425
        %523 = vmatpush.msra.mxu0 %v423
        %524 = vmatpush.msra.mxu0 %v421
        %525 = vmatpush.msra.mxu0 %v419
        %526 = vmatpush.msra.mxu0 %v417
        %527 = vmatpush.msra.mxu0 %v415
        %528 = vmatpush.msra.mxu0 %v413
        %529 = vmatpush.msra.mxu0 %v411
        %530 = vmatpush.msra.mxu0 %v409
        %531 = vmatpush.msra.mxu0 %v407
        %532 = vmatpush.msra.mxu0 %v405
        %533 = vmatpush.msra.mxu0 %v403
        %534 = vmatmul.f32.gmra.mxu0 %v365
        %v535 = vpop.f32.mrf.mxu0
        %v536 = vadd.f32 %v510, %v535
        %537 = vmatmul.f32.gmra.mxu0 %v367
        %v538 = vpop.f32.mrf.mxu0
        %v539 = vadd.f32 %v513, %v538
        %540 = vmatmul.f32.gmra.mxu0 %v369
        %v541 = vpop.f32.mrf.mxu0
        %v542 = vadd.f32 %v516, %v541
        %543 = vdwg.mxu0
        %v544 = vadd.f32 %v484, %v536
        %545 = vadd.xlane.f32.xlu0 %v544
        %v546 = vpop.xlane.xlu0 %545
        %v547 = vadd.f32 %v487, %v539
        %548 = vadd.xlane.f32.xlu0 %v547
        %v549 = vpop.xlane.xlu0 %548
        %v550 = vadd.f32 %v490, %v542
        %551 = vadd.xlane.f32.xlu0 %v550
        %v552 = vpop.xlane.xlu0 %551
        %v553 = vmul.f32 %v546, 0.00390625
        %v554 = vmul.f32 %v549, 0.00390625
        %v555 = vmul.f32 %v552, 0.00390625
        %v556 = vsub.f32 %v484, %v553
        %v557 = vsub.f32 %v536, %v553
        %v558 = vsub.f32 %v487, %v554
        %v559 = vsub.f32 %v539, %v554
        %v560 = vsub.f32 %v490, %v555
        %v561 = vsub.f32 %v542, %v555
        %v562 = vmul.f32 %v556, %v556
        %v563 = vmul.f32 %v557, %v557
        %v564 = vmul.f32 %v558, %v558
        %v565 = vmul.f32 %v559, %v559
        %v566 = vmul.f32 %v560, %v560
        %v567 = vmul.f32 %v561, %v561
        %v568 = vadd.f32 %v562, %v563
        %569 = vadd.xlane.f32.xlu0 %v568
        %v570 = vpop.xlane.xlu0 %569
        %v571 = vadd.f32 %v564, %v565
        %572 = vadd.xlane.f32.xlu0 %v571
        %v573 = vpop.xlane.xlu0 %572
        %v574 = vadd.f32 %v566, %v567
        %575 = vadd.xlane.f32.xlu0 %v574
        %v576 = vpop.xlane.xlu0 %575
        %v577 = vmul.f32 %v570, 0.00390625
        %v578 = vmul.f32 %v573, 0.00390625
        %v579 = vmul.f32 %v576, 0.00390625
        %v580 = vadd.f32 %v577, 1e-05
        %v581 = vadd.f32 %v578, 1e-05
        %v582 = vadd.f32 %v579, 1e-05
        %v583 = vrsqrt.pop %v580
        %v584 = vmul.f32 %v583, %v580
        %v585 = vmul.f32 %v584, %v583
        %v586 = vmul.f32 0.5, %v585
        %v587 = vsub.f32 1.5, %v586
        %v588 = vmul.f32 %v583, %v587
        %vm589 = vweird.f32 %v580
        %vm590 = vweird.f32 %v583
        %vm591 = vmor %vm589, %vm590
        %v592 = vsel %vm591, %v583, %v588
        %v593 = vrsqrt.pop %v581
        %v594 = vmul.f32 %v593, %v581
        %v595 = vmul.f32 %v594, %v593
        %v596 = vmul.f32 0.5, %v595
        %v597 = vsub.f32 1.5, %v596
        %v598 = vmul.f32 %v593, %v597
        %vm599 = vweird.f32 %v581
        %vm600 = vweird.f32 %v593
        %vm601 = vmor %vm599, %vm600
        %v602 = vsel %vm601, %v593, %v598
        %v603 = vrsqrt.pop %v582
        %v604 = vmul.f32 %v603, %v582
        %v605 = vmul.f32 %v604, %v603
        %v606 = vmul.f32 0.5, %v605
        %v607 = vsub.f32 1.5, %v606
        %v608 = vmul.f32 %v603, %v607
        %vm609 = vweird.f32 %v582
        %vm610 = vweird.f32 %v603
        %vm611 = vmor %vm609, %vm610
        %v612 = vsel %vm611, %v603, %v608
        %v613 = vmul.f32 %v556, %v592
        %v614 = vmul.f32 %v557, %v592
        %v615 = vmul.f32 %v558, %v602
        %v616 = vmul.f32 %v559, %v602
        %v617 = vmul.f32 %v560, %v612
        %v618 = vmul.f32 %v561, %v612
        %v619 = vld [vmem:[%s3] sm:$0x3]
        %v621 = vperm.slane %v619, 0
        %v622 = vperm.slane %v619, 1
        %v625 = vmul.f32 %v613, %v621
        %v626 = vmul.f32 %v614, %v622
        %v627 = vmul.f32 %v615, %v621
        %v628 = vmul.f32 %v616, %v622
        %v629 = vmul.f32 %v617, %v621
        %v630 = vmul.f32 %v618, %v622
        %v631 = vld [vmem:[#allocation8] sm:$0x3]
        %v633 = vperm.slane %v631, 0
        %v634 = vperm.slane %v631, 1
        %v637 = vadd.f32 %v625, %v633
        %v638 = vadd.f32 %v626, %v634
        %v639 = vadd.f32 %v627, %v633
        %v640 = vadd.f32 %v628, %v634
        %v641 = vadd.f32 %v629, %v633
        %v642 = vadd.f32 %v630, %v634
        %v643 = vmul.f32 %v637, 0.5
        %v644 = vmul.f32 %v638, 0.5
        %v645 = vmul.f32 %v639, 0.5
        %v646 = vmul.f32 %v640, 0.5
        %v647 = vmul.f32 %v641, 0.5
        %v648 = vmul.f32 %v642, 0.5
        %v649 = vmul.f32 %v637, 0.70710677
        %v650 = vmul.f32 %v638, 0.70710677
        %v651 = vmul.f32 %v639, 0.70710677
        %v652 = vmul.f32 %v640, 0.70710677
        %v653 = vmul.f32 %v641, 0.70710677
        %v654 = vmul.f32 %v642, 0.70710677
        %v655 = vmul.f32 %v649, %v649
        %v656 = vmin.f32 16.0, %v655
        %v657 = vmul.f32 %v656, 2.1237322e-06
        %v658 = vadd.f32 %v657, 0.00028619796
        %v659 = vmul.f32 %v656, %v658
        %v660 = vadd.f32 %v659, 0.0036580483
        %v661 = vmul.f32 %v656, %v660
        %v662 = vadd.f32 %v661, 0.05243302
        %v663 = vmul.f32 %v656, %v662
        %v664 = vadd.f32 %v663, 0.18741608
        %v665 = vmul.f32 %v656, %v664
        %v666 = vadd.f32 %v665, 1.1283791
        %v667 = vmul.f32 %v649, %v666
        %v668 = vmul.f32 %v656, 3.8918573e-05
        %v669 = vadd.f32 %v668, 0.001143296
        %v670 = vmul.f32 %v656, %v669
        %v671 = vadd.f32 %v670, 0.014752088
        %v672 = vmul.f32 %v656, %v671
        %v673 = vadd.f32 %v672, 0.112945676
        %v674 = vmul.f32 %v656, %v673
        %v675 = vadd.f32 %v674, 0.4994258
        %v676 = vmul.f32 %v656, %v675
        %v677 = vadd.f32 %v676, 1.0
        %v678 = vrcp.pop %v677
        %v679 = vmul.f32 %v677, %v678
        %v680 = vsub.f32 1.0, %v679
        %v681 = vmul.f32 %v678, %v680
        %v682 = vadd.f32 %v678, %v681
        %vm683 = vweird.f32 %v677
        %vm684 = vweird.f32 %v678
        %vm685 = vmor %vm683, %vm684
        %v686 = vsel %vm685, %v678, %v682
        %v687 = vand.u32 2147483647, %v677
        %vm688 = vcmp.eq.f32.partialorder %v687, 8.507059e+37
        %v689 = vand.u32 %v677, 2147483648
        %v690 = vor.u32 1.1754944e-38, %v689
        %v691 = vsel %vm688, %v690, %v686
        %v692 = vmul.f32 %v667, %v691
        %v693 = vmin.f32 %v692, 1.0
        %v694 = vmax.f32 %v693, -1.0
        %v695 = vmul.f32 %v650, %v650
        %v696 = vmin.f32 16.0, %v695
        %v697 = vmul.f32 %v696, 2.1237322e-06
        %v698 = vadd.f32 %v697, 0.00028619796
        %v699 = vmul.f32 %v696, %v698
        %v700 = vadd.f32 %v699, 0.0036580483
        %v701 = vmul.f32 %v696, %v700
        %v702 = vadd.f32 %v701, 0.05243302
        %v703 = vmul.f32 %v696, %v702
        %v704 = vadd.f32 %v703, 0.18741608
        %v705 = vmul.f32 %v696, %v704
        %v706 = vadd.f32 %v705, 1.1283791
        %v707 = vmul.f32 %v650, %v706
        %v708 = vmul.f32 %v696, 3.8918573e-05
        %v709 = vadd.f32 %v708, 0.001143296
        %v710 = vmul.f32 %v696, %v709
        %v711 = vadd.f32 %v710, 0.014752088
        %v712 = vmul.f32 %v696, %v711
        %v713 = vadd.f32 %v712, 0.112945676
        %v714 = vmul.f32 %v696, %v713
        %v715 = vadd.f32 %v714, 0.4994258
        %v716 = vmul.f32 %v696, %v715
        %v717 = vadd.f32 %v716, 1.0
        %v718 = vrcp.pop %v717
        %v719 = vmul.f32 %v717, %v718
        %v720 = vsub.f32 1.0, %v719
        %v721 = vmul.f32 %v718, %v720
        %v722 = vadd.f32 %v718, %v721
        %vm723 = vweird.f32 %v717
        %vm724 = vweird.f32 %v718
        %vm725 = vmor %vm723, %vm724
        %v726 = vsel %vm725, %v718, %v722
        %v727 = vand.u32 2147483647, %v717
        %vm728 = vcmp.eq.f32.partialorder %v727, 8.507059e+37
        %v729 = vand.u32 %v717, 2147483648
        %v730 = vor.u32 1.1754944e-38, %v729
        %v731 = vsel %vm728, %v730, %v726
        %v732 = vmul.f32 %v707, %v731
        %v733 = vmin.f32 %v732, 1.0
        %v734 = vmax.f32 %v733, -1.0
        %v735 = vmul.f32 %v651, %v651
        %v736 = vmin.f32 16.0, %v735
        %v737 = vmul.f32 %v736, 2.1237322e-06
        %v738 = vadd.f32 %v737, 0.00028619796
        %v739 = vmul.f32 %v736, %v738
        %v740 = vadd.f32 %v739, 0.0036580483
        %v741 = vmul.f32 %v736, %v740
        %v742 = vadd.f32 %v741, 0.05243302
        %v743 = vmul.f32 %v736, %v742
        %v744 = vadd.f32 %v743, 0.18741608
        %v745 = vmul.f32 %v736, %v744
        %v746 = vadd.f32 %v745, 1.1283791
        %v747 = vmul.f32 %v651, %v746
        %v748 = vmul.f32 %v736, 3.8918573e-05
        %v749 = vadd.f32 %v748, 0.001143296
        %v750 = vmul.f32 %v736, %v749
        %v751 = vadd.f32 %v750, 0.014752088
        %v752 = vmul.f32 %v736, %v751
        %v753 = vadd.f32 %v752, 0.112945676
        %v754 = vmul.f32 %v736, %v753
        %v755 = vadd.f32 %v754, 0.4994258
        %v756 = vmul.f32 %v736, %v755
        %v757 = vadd.f32 %v756, 1.0
        %v758 = vrcp.pop %v757
        %v759 = vmul.f32 %v757, %v758
        %v760 = vsub.f32 1.0, %v759
        %v761 = vmul.f32 %v758, %v760
        %v762 = vadd.f32 %v758, %v761
        %vm763 = vweird.f32 %v757
        %vm764 = vweird.f32 %v758
        %vm765 = vmor %vm763, %vm764
        %v766 = vsel %vm765, %v758, %v762
        %v767 = vand.u32 2147483647, %v757
        %vm768 = vcmp.eq.f32.partialorder %v767, 8.507059e+37
        %v769 = vand.u32 %v757, 2147483648
        %v770 = vor.u32 1.1754944e-38, %v769
        %v771 = vsel %vm768, %v770, %v766
        %v772 = vmul.f32 %v747, %v771
        %v773 = vmin.f32 %v772, 1.0
        %v774 = vmax.f32 %v773, -1.0
        %v775 = vmul.f32 %v652, %v652
        %v776 = vmin.f32 16.0, %v775
        %v777 = vmul.f32 %v776, 2.1237322e-06
        %v778 = vadd.f32 %v777, 0.00028619796
        %v779 = vmul.f32 %v776, %v778
        %v780 = vadd.f32 %v779, 0.0036580483
        %v781 = vmul.f32 %v776, %v780
        %v782 = vadd.f32 %v781, 0.05243302
        %v783 = vmul.f32 %v776, %v782
        %v784 = vadd.f32 %v783, 0.18741608
        %v785 = vmul.f32 %v776, %v784
        %v786 = vadd.f32 %v785, 1.1283791
        %v787 = vmul.f32 %v652, %v786
        %v788 = vmul.f32 %v776, 3.8918573e-05
        %v789 = vadd.f32 %v788, 0.001143296
        %v790 = vmul.f32 %v776, %v789
        %v791 = vadd.f32 %v790, 0.014752088
        %v792 = vmul.f32 %v776, %v791
        %v793 = vadd.f32 %v792, 0.112945676
        %v794 = vmul.f32 %v776, %v793
        %v795 = vadd.f32 %v794, 0.4994258
        %v796 = vmul.f32 %v776, %v795
        %v797 = vadd.f32 %v796, 1.0
        %v798 = vrcp.pop %v797
        %v799 = vmul.f32 %v797, %v798
        %v800 = vsub.f32 1.0, %v799
        %v801 = vmul.f32 %v798, %v800
        %v802 = vadd.f32 %v798, %v801
        %vm803 = vweird.f32 %v797
        %vm804 = vweird.f32 %v798
        %vm805 = vmor %vm803, %vm804
        %v806 = vsel %vm805, %v798, %v802
        %v807 = vand.u32 2147483647, %v797
        %vm808 = vcmp.eq.f32.partialorder %v807, 8.507059e+37
        %v809 = vand.u32 %v797, 2147483648
        %v810 = vor.u32 1.1754944e-38, %v809
        %v811 = vsel %vm808, %v810, %v806
        %v812 = vmul.f32 %v787, %v811
        %v813 = vmin.f32 %v812, 1.0
        %v814 = vmax.f32 %v813, -1.0
        %v815 = vmul.f32 %v653, %v653
        %v816 = vmin.f32 16.0, %v815
        %v817 = vmul.f32 %v816, 2.1237322e-06
        %v818 = vadd.f32 %v817, 0.00028619796
        %v819 = vmul.f32 %v816, %v818
        %v820 = vadd.f32 %v819, 0.0036580483
        %v821 = vmul.f32 %v816, %v820
        %v822 = vadd.f32 %v821, 0.05243302
        %v823 = vmul.f32 %v816, %v822
        %v824 = vadd.f32 %v823, 0.18741608
        %v825 = vmul.f32 %v816, %v824
        %v826 = vadd.f32 %v825, 1.1283791
        %v827 = vmul.f32 %v653, %v826
        %v828 = vmul.f32 %v816, 3.8918573e-05
        %v829 = vadd.f32 %v828, 0.001143296
        %v830 = vmul.f32 %v816, %v829
        %v831 = vadd.f32 %v830, 0.014752088
        %v832 = vmul.f32 %v816, %v831
        %v833 = vadd.f32 %v832, 0.112945676
        %v834 = vmul.f32 %v816, %v833
        %v835 = vadd.f32 %v834, 0.4994258
        %v836 = vmul.f32 %v816, %v835
        %v837 = vadd.f32 %v836, 1.0
        %v838 = vrcp.pop %v837
        %v839 = vmul.f32 %v837, %v838
        %v840 = vsub.f32 1.0, %v839
        %v841 = vmul.f32 %v838, %v840
        %v842 = vadd.f32 %v838, %v841
        %vm843 = vweird.f32 %v837
        %vm844 = vweird.f32 %v838
        %vm845 = vmor %vm843, %vm844
        %v846 = vsel %vm845, %v838, %v842
        %v847 = vand.u32 2147483647, %v837
        %vm848 = vcmp.eq.f32.partialorder %v847, 8.507059e+37
        %v849 = vand.u32 %v837, 2147483648
        %v850 = vor.u32 1.1754944e-38, %v849
        %v851 = vsel %vm848, %v850, %v846
        %v852 = vmul.f32 %v827, %v851
        %v853 = vmin.f32 %v852, 1.0
        %v854 = vmax.f32 %v853, -1.0
        %v855 = vmul.f32 %v654, %v654
        %v856 = vmin.f32 16.0, %v855
        %v857 = vmul.f32 %v856, 2.1237322e-06
        %v858 = vadd.f32 %v857, 0.00028619796
        %v859 = vmul.f32 %v856, %v858
        %v860 = vadd.f32 %v859, 0.0036580483
        %v861 = vmul.f32 %v856, %v860
        %v862 = vadd.f32 %v861, 0.05243302
        %v863 = vmul.f32 %v856, %v862
        %v864 = vadd.f32 %v863, 0.18741608
        %v865 = vmul.f32 %v856, %v864
        %v866 = vadd.f32 %v865, 1.1283791
        %v867 = vmul.f32 %v654, %v866
        %v868 = vmul.f32 %v856, 3.8918573e-05
        %v869 = vadd.f32 %v868, 0.001143296
        %v870 = vmul.f32 %v856, %v869
        %v871 = vadd.f32 %v870, 0.014752088
        %v872 = vmul.f32 %v856, %v871
        %v873 = vadd.f32 %v872, 0.112945676
        %v874 = vmul.f32 %v856, %v873
        %v875 = vadd.f32 %v874, 0.4994258
        %v876 = vmul.f32 %v856, %v875
        %v877 = vadd.f32 %v876, 1.0
        %v878 = vrcp.pop %v877
        %v879 = vmul.f32 %v877, %v878
        %v880 = vsub.f32 1.0, %v879
        %v881 = vmul.f32 %v878, %v880
        %v882 = vadd.f32 %v878, %v881
        %vm883 = vweird.f32 %v877
        %vm884 = vweird.f32 %v878
        %vm885 = vmor %vm883, %vm884
        %v886 = vsel %vm885, %v878, %v882
        %v887 = vand.u32 2147483647, %v877
        %vm888 = vcmp.eq.f32.partialorder %v887, 8.507059e+37
        %v889 = vand.u32 %v877, 2147483648
        %v890 = vor.u32 1.1754944e-38, %v889
        %v891 = vsel %vm888, %v890, %v886
        %v892 = vmul.f32 %v867, %v891
        %v893 = vmin.f32 %v892, 1.0
        %v894 = vmax.f32 %v893, -1.0
        %v895 = vadd.f32 %v694, 1.0
        %v896 = vadd.f32 %v734, 1.0
        %v897 = vadd.f32 %v774, 1.0
        %v898 = vadd.f32 %v814, 1.0
        %v899 = vadd.f32 %v854, 1.0
        %v900 = vadd.f32 %v894, 1.0
        %v901 = vmul.f32 %v643, %v895
        %v902 = vmul.f32 %v644, %v896
        %v903 = vmul.f32 %v645, %v897
        %v904 = vmul.f32 %v646, %v898
        %v905 = vmul.f32 %v647, %v899
        %v906 = vmul.f32 %v648, %v900
        %v907 = vld [vmem:[#allocation10] sm:$0xff]
        %v908 = vld [vmem:[#allocation10 + $0x8] sm:$0xff]
        %v909 = vld [vmem:[#allocation10 + $0x10] sm:$0xff]
        %v910 = vld [vmem:[#allocation10 + $0x18] sm:$0xff]
        %v911 = vld [vmem:[#allocation10 + $0x20] sm:$0xff]
        %v912 = vld [vmem:[#allocation10 + $0x28] sm:$0xff]
        %v913 = vld [vmem:[#allocation10 + $0x30] sm:$0xff]
        %v914 = vld [vmem:[#allocation10 + $0x38] sm:$0xff]
        %v915 = vld [vmem:[#allocation10 + $0x40] sm:$0xff]
        %v916 = vld [vmem:[#allocation10 + $0x48] sm:$0xff]
        %v917 = vld [vmem:[#allocation10 + $0x50] sm:$0xff]
        %v918 = vld [vmem:[#allocation10 + $0x58] sm:$0xff]
        %v919 = vld [vmem:[#allocation10 + $0x60] sm:$0xff]
        %v920 = vld [vmem:[#allocation10 + $0x68] sm:$0xff]
        %v921 = vld [vmem:[#allocation10 + $0x70] sm:$0xff]
        %v922 = vld [vmem:[#allocation10 + $0x78] sm:$0xff]
        %v923 = vld [vmem:[#allocation10 + $0x80] sm:$0xff]
        %v924 = vld [vmem:[#allocation10 + $0x88] sm:$0xff]
        %v925 = vld [vmem:[#allocation10 + $0x90] sm:$0xff]
        %v926 = vld [vmem:[#allocation10 + $0x98] sm:$0xff]
        %v927 = vld [vmem:[#allocation10 + $0xa0] sm:$0xff]
        %v928 = vld [vmem:[#allocation10 + $0xa8] sm:$0xff]
        %v929 = vld [vmem:[#allocation10 + $0xb0] sm:$0xff]
        %v930 = vld [vmem:[#allocation10 + $0xb8] sm:$0xff]
        %v931 = vld [vmem:[#allocation10 + $0xc0] sm:$0xff]
        %v932 = vld [vmem:[#allocation10 + $0xc8] sm:$0xff]
        %v933 = vld [vmem:[#allocation10 + $0xd0] sm:$0xff]
        %v934 = vld [vmem:[#allocation10 + $0xd8] sm:$0xff]
        %v935 = vld [vmem:[#allocation10 + $0xe0] sm:$0xff]
        %v936 = vld [vmem:[#allocation10 + $0xe8] sm:$0xff]
        %v937 = vld [vmem:[#allocation10 + $0xf0] sm:$0xff]
        %v938 = vld [vmem:[#allocation10 + $0xf8] sm:$0xff]
        %v939 = vld [vmem:[%s6] sm:$0x1]
        %v941 = vperm.slane %v939, 0
        %943 = vmatpush.msra.mxu0 %v922
        %944 = vmatpush.msra.mxu0 %v921
        %945 = vmatpush.msra.mxu0 %v920
        %946 = vmatpush.msra.mxu0 %v919
        %947 = vmatpush.msra.mxu0 %v918
        %948 = vmatpush.msra.mxu0 %v917
        %949 = vmatpush.msra.mxu0 %v916
        %950 = vmatpush.msra.mxu0 %v915
        %951 = vmatpush.msra.mxu0 %v914
        %952 = vmatpush.msra.mxu0 %v913
        %953 = vmatpush.msra.mxu0 %v912
        %954 = vmatpush.msra.mxu0 %v911
        %955 = vmatpush.msra.mxu0 %v910
        %956 = vmatpush.msra.mxu0 %v909
        %957 = vmatpush.msra.mxu0 %v908
        %958 = vmatpush.msra.mxu0 %v907
        %959 = vmatmul.f32.gmra.mxu0 %v901
        %v960 = vpop.f32.mrf.mxu0
        %v961 = vadd.f32 %v941, %v960
        %962 = vmatmul.f32.gmra.mxu0 %v903
        %v963 = vpop.f32.mrf.mxu0
        %v964 = vadd.f32 %v941, %v963
        %965 = vmatmul.f32.gmra.mxu0 %v905
        %v966 = vpop.f32.mrf.mxu0
        %v967 = vadd.f32 %v941, %v966
        %968 = vdwg.mxu0
        %969 = vmatpush.msra.mxu0 %v938
        %970 = vmatpush.msra.mxu0 %v937
        %971 = vmatpush.msra.mxu0 %v936
        %972 = vmatpush.msra.mxu0 %v935
        %973 = vmatpush.msra.mxu0 %v934
        %974 = vmatpush.msra.mxu0 %v933
        %975 = vmatpush.msra.mxu0 %v932
        %976 = vmatpush.msra.mxu0 %v931
        %977 = vmatpush.msra.mxu0 %v930
        %978 = vmatpush.msra.mxu0 %v929
        %979 = vmatpush.msra.mxu0 %v928
        %980 = vmatpush.msra.mxu0 %v927
        %981 = vmatpush.msra.mxu0 %v926
        %982 = vmatpush.msra.mxu0 %v925
        %983 = vmatpush.msra.mxu0 %v924
        %984 = vmatpush.msra.mxu0 %v923
        %985 = vmatmul.f32.gmra.mxu0 %v902
        %v986 = vpop.f32.mrf.mxu0
        %v987 = vadd.f32 %v961, %v986
        %988 = vmatmul.f32.gmra.mxu0 %v904
        %v989 = vpop.f32.mrf.mxu0
        %v990 = vadd.f32 %v964, %v989
        %991 = vmatmul.f32.gmra.mxu0 %v906
        %v992 = vpop.f32.mrf.mxu0
        %v993 = vadd.f32 %v967, %v992
        %994 = vdwg.mxu0
        %995 = vst [vmem:[%s361] sm:$0xff] %v987
        %996 = vst [vmem:[%s361 + $0x8] sm:$0xff] %v990
        %997 = vst [vmem:[%s361 + $0x10] sm:$0xff] %v993
        %s998 = sand.u32 %s186, 1
        %s999 = scalar_lea.sflag [#allocation4], %s998
        %s1000 = sand.u32 %s186, 1
        %s1001 = smul.addr %s1000, 24
        %s1002 = scalar_lea.vmem [#allocation11], %s1001
        // Predicated region
        $region69: #{tpu_custom_call.1} parent=47 // pred_check
          %p1003 = pneg %p196
        $region70: #{tpu_custom_call.1} parent=47 // pred_check_branch
          %1005 = sbr.rel (%p1003) target = $region72
        $region71: #{tpu_custom_call.1} parent=47 // pred_region
          %s1006 = smul.u32 3, %s26
          %1008 = vsyncadd %s999, 0
          %s1009 = smul.addr %s1006, 8
          %s1010 = scalar_lea.hbm %s7, %s1009
          %s1011 = sshll.u32 %s1002, 4
          %s1012 = int_to_ptr.vmem [resolvable:$true] %s1011
          %s1013 = sshll.u32 %s1010, 4
          %s1014 = int_to_ptr.hbm [resolvable:$true] %s1013
          %1019 = dma.vmem_to_hbm [thread:$0]  %s1012, 384, %s1014, %s999, 128, 128, 8
        $region72: #{tpu_custom_call.1} parent=47 // pred_fallthru
          _
      $region48: #{tpu_custom_call.1} parent=5 // pred_fallthru
        _
      %p1020 = scmp.le.s32.totalorder 2, %s21
      // Predicated region
      $region73: #{tpu_custom_call.1} parent=5 // pred_check
        %p1021 = pneg %p1020
      $region74: #{tpu_custom_call.1} parent=5 // pred_check_branch
        %1023 = sbr.rel (%p1021) target = $region76
      $region75: #{tpu_custom_call.1} parent=5 // pred_region
        %s1024 = ssub.s32 %s21, 2
        // Predicated region
        $region77: #{tpu_custom_call.1} parent=75 // pred_check
          %p1025 = pneg %p202
        $region78: #{tpu_custom_call.1} parent=75 // pred_check_branch
          %1027 = sbr.rel (%p1025) target = $region80
        $region79: #{tpu_custom_call.1} parent=75 // pred_region
          %s1028 = sand.u32 %s187, 1
          %s1029 = scalar_lea.sflag [#allocation4], %s1028
          %s1030 = sand.u32 %s187, 1
          %s1031 = smul.addr %s1030, 24
          %s1032 = scalar_lea.vmem [#allocation11], %s1031
          %1034 = dma.done %s1029, 384
        $region80: #{tpu_custom_call.1} parent=75 // pred_fallthru
          _
      $region76: #{tpu_custom_call.1} parent=5 // pred_fallthru
        _
    $region6: #{tpu_custom_call.1} parent=1 // loop_footer
      %s25 = sadd.s32 1, %s21
    $region7: #{tpu_custom_call.1} parent=1 // loop_footer_branch
      %20 = sbr.rel target = $region3
    $region8: #{tpu_custom_call.1} parent=1 // loop_exit
      _
    %1035 = vsyncpa [#allocation3], 1
    %s1036 = scalar_lea.sflag [#allocation3], 1
    %1037 = vsyncpa %s1036, 1
    %1038 = vsyncpa [#allocation6], 1
    %1039 = vsyncpa [#allocation9], 1
    %1040 = vsyncpa [#allocation4], 1
    %s1041 = scalar_lea.sflag [#allocation4], 1
    %1042 = vsyncpa %s1041, 1

// kernel: tpu_custom_call.1
$region0: #{tpu_custom_call.1}
  #allocation0 [shape = 'u32[]', space=smem, size = 0x4, offset = 0x4, fixed_abs, tag = 'smem constant byte address 0x4 - core index']
  #allocation1 [shape = 'u32[72,128]{1,0:T(1,128)}', space=vmem, size = 0x9000, scoped, tag = 'internal scratch']
  %s0 = inlined_call_operand.hbm [shape: f32[48,256], index: 0, kind: input, shape index: {}]
  %s1 = inlined_call_operand.hbm [shape: f32[256,256], index: 1, kind: input, shape index: {}]
  %s2 = inlined_call_operand.hbm [shape: f32[1,256], index: 2, kind: input, shape index: {}]
  %s3 = inlined_call_operand.vmem [shape: f32[1,256], index: 3, kind: input, shape index: {}]
  %s4 = inlined_call_operand.hbm [shape: f32[1,256], index: 4, kind: input, shape index: {}]
  %s5 = inlined_call_operand.hbm [shape: f32[256,128], index: 5, kind: input, shape index: {}]
  %s6 = inlined_call_operand.vmem [shape: f32[1,128], index: 6, kind: input, shape index: {}]
  %s7 = inlined_call_operand.hbm [shape: f32[48,128], index: 7, kind: output, shape index: {}]
  %s8 = sld [smem:[#allocation0]]
  $region81: #{tpu_custom_call.1} parent=0
    _
  %s10 = ssub.s32 1, %s8
  %s11 = scalar_select 0, %s10, %s8
  $region1: #{tpu_custom_call.1} parent=0
    #allocation2 [shape = 'u8[49152]{0}', space=vmem, size = 0xc000, scoped, tag = 'input window, operand 0']
    #allocation3 [shape = 's32[2]{0}', space=sflag, size = 0x8, scoped, tag = 'scoped memory for tpu_custom_call.1']
    #allocation4 [shape = 's32[2]{0}', space=sflag, size = 0x8, scoped, tag = 'scoped memory for tpu_custom_call.1']
    #allocation5 [shape = 'u8[262144]{0}', space=vmem, size = 0x40000, scoped, tag = 'input window, operand 1, single buffered']
    #allocation6 [shape = 's32[1]{0}', space=sflag, size = 0x4, scoped, tag = 'scoped memory for tpu_custom_call.1']
    #allocation7 [shape = 'u8[1024]{0}', space=vmem, size = 0x400, scoped, tag = 'input window, operand 2, single buffered']
    #allocation8 [shape = 'u8[1024]{0}', space=vmem, size = 0x400, scoped, tag = 'input window, operand 4, single buffered']
    #allocation9 [shape = 's32[1]{0}', space=sflag, size = 0x4, scoped, tag = 'scoped memory for tpu_custom_call.1']
    #allocation10 [shape = 'u8[131072]{0}', space=vmem, size = 0x20000, scoped, tag = 'input window, operand 5, single buffered']
    #allocation11 [shape = 'u8[24576]{0}', space=vmem, size = 0x6000, scoped, tag = 'output window, operand 0']
    %12 = vsyncpa [#allocation3], 0
    %s13 = scalar_lea.sflag [#allocation3], 1
    %14 = vsyncpa %s13, 0
    %15 = vsyncpa [#allocation6], 0
    %16 = vsyncpa [#allocation9], 0
    %17 = vsyncpa [#allocation4], 0
    %s18 = scalar_lea.sflag [#allocation4], 1
    %19 = vsyncpa %s18, 0
    loop: start=0, step=1, limit=4
    $region2: #{tpu_custom_call.1} parent=1 // loop_pre_header
      _
    $region3: #{tpu_custom_call.1} parent=1 // loop_header
      %s21 = sphi 0, %s25
      %p22 = scmp.ge.s32.totalorder %s21, 4
      %s31 = sphi 0, %s33
      %s34 = sphi 0, %s31
      %s35 = sphi 0, %s34
      %s51 = sphi 0, %s35
      %s55 = sphi 0, %s55
      %s57 = sphi 0, %s55
      %s58 = sphi 0, %s57
      %s72 = sphi 0, %s58
      %s76 = sphi 0, %s76
      %s78 = sphi 0, %s76
      %s79 = sphi 0, %s78
      %s93 = sphi 0, %s79
      %s97 = sphi 0, %s97
      %s99 = sphi 0, %s97
      %s100 = sphi 0, %s99
      %s114 = sphi 0, %s100
      %s118 = sphi 0, %s118
      %s120 = sphi 0, %s118
      %s121 = sphi 0, %s120
      %s135 = sphi 0, %s121
      %s139 = sphi 0, %s139
      %s141 = sphi 0, %s139
      %s142 = sphi 0, %s141
      %s156 = sphi 0, %s142
      %s160 = sphi 0, %s160
      %s162 = sphi 0, %s160
      %s163 = sphi 0, %s162
      %s177 = sphi 0, %s163
      %s183 = sphi 0, %s185
      %s186 = sphi 0, %s183
      %s187 = sphi 0, %s186
      %s203 = sphi 0, %s187
    $region4: #{tpu_custom_call.1} parent=1 // loop_header_branch
      %24 = sbr.rel (%p22) target = $region8
    $region5: #{tpu_custom_call.1} parent=1 // loop_body
      %s26 = ssub.s32 %s21, 1
      %s27 = ssub.s32 %s21, 2
      %s28 = sadd.s32 %s21, 1
      %s29 = ssub.s32 %s21, %s28
      %p30 = scmp.eq.s32.totalorder %s29, 0
      %s32 = sadd.s32 %s31, 1
      %s33 = scalar_select %p30, %s31, %s32
      %p36 = pneg %p30
      %p37 = scmp.eq.s32.totalorder %s21, 1
      %p38 = por %p36, %p37
      %p39 = scmp.ne.s32.totalorder %s31, %s34
      %p40 = scmp.eq.s32.totalorder %s21, 0
      %p41 = por %p39, %p40
      %p42 = scmp.ne.s32.totalorder %s31, %s34
      %p43 = scmp.eq.s32.totalorder %s26, 1
      %p44 = por %p42, %p43
      %p45 = scmp.ne.s32.totalorder %s34, %s35
      %p46 = scmp.eq.s32.totalorder %s26, 0
      %p47 = por %p45, %p46
      %p48 = scmp.ne.s32.totalorder %s34, %s35
      %p49 = scmp.eq.s32.totalorder %s27, 1
      %p50 = por %p48, %p49
      %p52 = scmp.ne.s32.totalorder %s35, %s51
      %p53 = scmp.eq.s32.totalorder %s27, 0
      %p54 = por %p52, %p53
      %s56 = sadd.s32 %s55, 1
      %p59 = scmp.eq.s32.totalorder %s21, 1
      %p60 = scmp.ne.s32.totalorder %s55, %s57
      %p61 = scmp.eq.s32.totalorder %s21, 0
      %p62 = por %p60, %p61
      %p63 = scmp.ne.s32.totalorder %s55, %s57
      %p64 = scmp.eq.s32.totalorder %s26, 1
      %p65 = por %p63, %p64
      %p66 = scmp.ne.s32.totalorder %s57, %s58
      %p67 = scmp.eq.s32.totalorder %s26, 0
      %p68 = por %p66, %p67
      %p69 = scmp.ne.s32.totalorder %s57, %s58
      %p70 = scmp.eq.s32.totalorder %s27, 1
      %p71 = por %p69, %p70
      %p73 = scmp.ne.s32.totalorder %s58, %s72
      %p74 = scmp.eq.s32.totalorder %s27, 0
      %p75 = por %p73, %p74
      %s77 = sadd.s32 %s76, 1
      %p80 = scmp.eq.s32.totalorder %s21, 1
      %p81 = scmp.ne.s32.totalorder %s76, %s78
      %p82 = scmp.eq.s32.totalorder %s21, 0
      %p83 = por %p81, %p82
      %p84 = scmp.ne.s32.totalorder %s76, %s78
      %p85 = scmp.eq.s32.totalorder %s26, 1
      %p86 = por %p84, %p85
      %p87 = scmp.ne.s32.totalorder %s78, %s79
      %p88 = scmp.eq.s32.totalorder %s26, 0
      %p89 = por %p87, %p88
      %p90 = scmp.ne.s32.totalorder %s78, %s79
      %p91 = scmp.eq.s32.totalorder %s27, 1
      %p92 = por %p90, %p91
      %p94 = scmp.ne.s32.totalorder %s79, %s93
      %p95 = scmp.eq.s32.totalorder %s27, 0
      %p96 = por %p94, %p95
      %s98 = sadd.s32 %s97, 1
      %p101 = scmp.eq.s32.totalorder %s21, 1
      %p102 = scmp.ne.s32.totalorder %s97, %s99
      %p103 = scmp.eq.s32.totalorder %s21, 0
      %p104 = por %p102, %p103
      %p105 = scmp.ne.s32.totalorder %s97, %s99
      %p106 = scmp.eq.s32.totalorder %s26, 1
      %p107 = por %p105, %p106
      %p108 = scmp.ne.s32.totalorder %s99, %s100
      %p109 = scmp.eq.s32.totalorder %s26, 0
      %p110 = por %p108, %p109
      %p111 = scmp.ne.s32.totalorder %s99, %s100
      %p112 = scmp.eq.s32.totalorder %s27, 1
      %p113 = por %p111, %p112
      %p115 = scmp.ne.s32.totalorder %s100, %s114
      %p116 = scmp.eq.s32.totalorder %s27, 0
      %p117 = por %p115, %p116
      %s119 = sadd.s32 %s118, 1
      %p122 = scmp.eq.s32.totalorder %s21, 1
      %p123 = scmp.ne.s32.totalorder %s118, %s120
      %p124 = scmp.eq.s32.totalorder %s21, 0
      %p125 = por %p123, %p124
      %p126 = scmp.ne.s32.totalorder %s118, %s120
      %p127 = scmp.eq.s32.totalorder %s26, 1
      %p128 = por %p126, %p127
      %p129 = scmp.ne.s32.totalorder %s120, %s121
      %p130 = scmp.eq.s32.totalorder %s26, 0
      %p131 = por %p129, %p130
      %p132 = scmp.ne.s32.totalorder %s120, %s121
      %p133 = scmp.eq.s32.totalorder %s27, 1
      %p134 = por %p132, %p133
      %p136 = scmp.ne.s32.totalorder %s121, %s135
      %p137 = scmp.eq.s32.totalorder %s27, 0
      %p138 = por %p136, %p137
      %s140 = sadd.s32 %s139, 1
      %p143 = scmp.eq.s32.totalorder %s21, 1
      %p144 = scmp.ne.s32.totalorder %s139, %s141
      %p145 = scmp.eq.s32.totalorder %s21, 0
      %p146 = por %p144, %p145
      %p147 = scmp.ne.s32.totalorder %s139, %s141
      %p148 = scmp.eq.s32.totalorder %s26, 1
      %p149 = por %p147, %p148
      %p150 = scmp.ne.s32.totalorder %s141, %s142
      %p151 = scmp.eq.s32.totalorder %s26, 0
      %p152 = por %p150, %p151
      %p153 = scmp.ne.s32.totalorder %s141, %s142
      %p154 = scmp.eq.s32.totalorder %s27, 1
      %p155 = por %p153, %p154
      %p157 = scmp.ne.s32.totalorder %s142, %s156
      %p158 = scmp.eq.s32.totalorder %s27, 0
      %p159 = por %p157, %p158
      %s161 = sadd.s32 %s160, 1
      %p164 = scmp.eq.s32.totalorder %s21, 1
      %p165 = scmp.ne.s32.totalorder %s160, %s162
      %p166 = scmp.eq.s32.totalorder %s21, 0
      %p167 = por %p165, %p166
      %p168 = scmp.ne.s32.totalorder %s160, %s162
      %p169 = scmp.eq.s32.totalorder %s26, 1
      %p170 = por %p168, %p169
      %p171 = scmp.ne.s32.totalorder %s162, %s163
      %p172 = scmp.eq.s32.totalorder %s26, 0
      %p173 = por %p171, %p172
      %p174 = scmp.ne.s32.totalorder %s162, %s163
      %p175 = scmp.eq.s32.totalorder %s27, 1
      %p176 = por %p174, %p175
      %p178 = scmp.ne.s32.totalorder %s163, %s177
      %p179 = scmp.eq.s32.totalorder %s27, 0
      %p180 = por %p178, %p179
      %s181 = ssub.s32 %s21, %s28
      %p182 = scmp.eq.s32.totalorder %s181, 0
      %s184 = sadd.s32 %s183, 1
      %s185 = scalar_select %p182, %s183, %s184
      %p188 = pneg %p182
      %p189 = scmp.eq.s32.totalorder %s21, 1
      %p190 = por %p188, %p189
      %p191 = scmp.ne.s32.totalorder %s183, %s186
      %p192 = scmp.eq.s32.totalorder %s21, 0
      %p193 = por %p191, %p192
      %p194 = scmp.ne.s32.totalorder %s183, %s186
      %p195 = scmp.eq.s32.totalorder %s26, 1
      %p196 = por %p194, %p195
      %p197 = scmp.ne.s32.totalorder %s186, %s187
      %p198 = scmp.eq.s32.totalorder %s26, 0
      %p199 = por %p197, %p198
      %p200 = scmp.ne.s32.totalorder %s186, %s187
      %p201 = scmp.eq.s32.totalorder %s27, 1
      %p202 = por %p200, %p201
      %p204 = scmp.ne.s32.totalorder %s187, %s203
      %p205 = scmp.eq.s32.totalorder %s27, 0
      %p206 = por %p204, %p205
      %p207 = scmp.le.s32.totalorder 1, %s21
      %p208 = scmp.lt.s32.totalorder %s21, 3
      %p209 = pnand %p207, %p208
      %p210 = pneg %p209
      // Predicated region
      $region9: #{tpu_custom_call.1} parent=5 // pred_check
        _
      $region10: #{tpu_custom_call.1} parent=5 // pred_check_branch
        %212 = sbr.rel (%p209) target = $region12
      $region11: #{tpu_custom_call.1} parent=5 // pred_region
        %s213 = ssub.s32 %s21, 1
        // Predicated region
        $region13: #{tpu_custom_call.1} parent=11 // pred_check
          %p214 = pneg %p68
        $region14: #{tpu_custom_call.1} parent=11 // pred_check_branch
          %216 = sbr.rel (%p214) target = $region16
        $region15: #{tpu_custom_call.1} parent=11 // pred_region
          %218 = vsyncadd [#allocation6], 0
          %s219 = sshll.u32 %s1, 4
          %s220 = int_to_ptr.hbm [resolvable:$true] %s219
          %s221 = sshll.u32 [#allocation5], 4
          %s222 = int_to_ptr.vmem [resolvable:$true] %s221
          %227 = dma.hbm_to_vmem [thread:$0]  %s220, 8192, %s222, [#allocation6], 256, 256, 16
        $region16: #{tpu_custom_call.1} parent=11 // pred_fallthru
          _
        // Predicated region
        $region17: #{tpu_custom_call.1} parent=11 // pred_check
          %p228 = pneg %p89
        $region18: #{tpu_custom_call.1} parent=11 // pred_check_branch
          %230 = sbr.rel (%p228) target = $region20
        $region19: #{tpu_custom_call.1} parent=11 // pred_region
          %232 = vsyncadd [#allocation6], 0
          %s234 = sshll.u32 %s2, 4
          %s235 = int_to_ptr.hbm [resolvable:$true] %s234
          %s236 = sshll.u32 [#allocation7], 4
          %s237 = int_to_ptr.vmem [resolvable:$true] %s236
          %239 = dma.hbm_to_vmem [thread:$0]  %s235, 32, %s237, [#allocation6]
        $region20: #{tpu_custom_call.1} parent=11 // pred_fallthru
          _
        // Predicated region
        $region21: #{tpu_custom_call.1} parent=11 // pred_check
          %p240 = pneg %p110
        $region22: #{tpu_custom_call.1} parent=11 // pred_check_branch
          %242 = sbr.rel (%p240) target = $region24
        $region23: #{tpu_custom_call.1} parent=11 // pred_region
          _
        $region24: #{tpu_custom_call.1} parent=11 // pred_fallthru
          _
        // Predicated region
        $region25: #{tpu_custom_call.1} parent=11 // pred_check
          %p243 = pneg %p131
        $region26: #{tpu_custom_call.1} parent=11 // pred_check_branch
          %245 = sbr.rel (%p243) target = $region28
        $region27: #{tpu_custom_call.1} parent=11 // pred_region
          %247 = vsyncadd [#allocation9], 0
          %s249 = sshll.u32 %s4, 4
          %s250 = int_to_ptr.hbm [resolvable:$true] %s249
          %s251 = sshll.u32 [#allocation8], 4
          %s252 = int_to_ptr.vmem [resolvable:$true] %s251
          %254 = dma.hbm_to_vmem [thread:$0]  %s250, 32, %s252, [#allocation9]
        $region28: #{tpu_custom_call.1} parent=11 // pred_fallthru
          _
        // Predicated region
        $region29: #{tpu_custom_call.1} parent=11 // pred_check
          %p255 = pneg %p152
        $region30: #{tpu_custom_call.1} parent=11 // pred_check_branch
          %257 = sbr.rel (%p255) target = $region32
        $region31: #{tpu_custom_call.1} parent=11 // pred_region
          %259 = vsyncadd [#allocation9], 0
          %s260 = sshll.u32 %s5, 4
          %s261 = int_to_ptr.hbm [resolvable:$true] %s260
          %s262 = sshll.u32 [#allocation10], 4
          %s263 = int_to_ptr.vmem [resolvable:$true] %s262
          %268 = dma.hbm_to_vmem [thread:$0]  %s261, 4096, %s263, [#allocation9], 128, 128, 8
        $region32: #{tpu_custom_call.1} parent=11 // pred_fallthru
          _
        // Predicated region
        $region33: #{tpu_custom_call.1} parent=11 // pred_check
          %p269 = pneg %p173
        $region34: #{tpu_custom_call.1} parent=11 // pred_check_branch
          %271 = sbr.rel (%p269) target = $region36
        $region35: #{tpu_custom_call.1} parent=11 // pred_region
          _
        $region36: #{tpu_custom_call.1} parent=11 // pred_fallthru
          _
      $region12: #{tpu_custom_call.1} parent=5 // pred_fallthru
        _
      %p272 = scmp.lt.s32.totalorder %s21, 2
      // Predicated region
      $region37: #{tpu_custom_call.1} parent=5 // pred_check
        %p273 = pneg %p272
      $region38: #{tpu_custom_call.1} parent=5 // pred_check_branch
        %275 = sbr.rel (%p273) target = $region40
      $region39: #{tpu_custom_call.1} parent=5 // pred_region
        // Predicated region
        $region41: #{tpu_custom_call.1} parent=39 // pred_check
          %p276 = pneg %p41
        $region42: #{tpu_custom_call.1} parent=39 // pred_check_branch
          %278 = sbr.rel (%p276) target = $region44
        $region43: #{tpu_custom_call.1} parent=39 // pred_region
          %s279 = sand.u32 %s31, 1
          %s280 = scalar_lea.sflag [#allocation3], %s279
          %s281 = sand.u32 %s31, 1
          %s282 = smul.addr %s281, 48
          %s283 = scalar_lea.vmem [#allocation2], %s282
          %s284 = smul.u32 3, %s21
          %286 = vsyncadd %s280, 0
          %s287 = smul.addr %s284, 2
          %s288 = smul.addr %s287, 8
          %s289 = scalar_lea.hbm %s0, %s288
          %s290 = sshll.u32 %s289, 4
          %s291 = int_to_ptr.hbm [resolvable:$true] %s290
          %s292 = sshll.u32 %s283, 4
          %s293 = int_to_ptr.vmem [resolvable:$true] %s292
          %298 = dma.hbm_to_vmem [thread:$0]  %s291, 768, %s293, %s280, 256, 256, 16
        $region44: #{tpu_custom_call.1} parent=39 // pred_fallthru
          _
      $region40: #{tpu_custom_call.1} parent=5 // pred_fallthru
        _
      %p299 = scmp.le.s32.totalorder 1, %s21
      %p300 = scmp.lt.s32.totalorder %s21, 3
      %p301 = pnand %p299, %p300
      %p302 = pneg %p301
      // Predicated region
      $region45: #{tpu_custom_call.1} parent=5 // pred_check
        _
      $region46: #{tpu_custom_call.1} parent=5 // pred_check_branch
        %304 = sbr.rel (%p301) target = $region48
      $region47: #{tpu_custom_call.1} parent=5 // pred_region
        %s305 = ssub.s32 %s21, 1
        %s306 = sand.u32 %s34, 1
        %s307 = scalar_lea.sflag [#allocation3], %s306
        %s308 = sand.u32 %s34, 1
        %s309 = smul.addr %s308, 48
        %s310 = scalar_lea.vmem [#allocation2], %s309
        // Predicated region
        $region49: #{tpu_custom_call.1} parent=47 // pred_check
          %p311 = pneg %p47
        $region50: #{tpu_custom_call.1} parent=47 // pred_check_branch
          %313 = sbr.rel (%p311) target = $region52
        $region51: #{tpu_custom_call.1} parent=47 // pred_region
          %315 = dma.done %s307, 768
        $region52: #{tpu_custom_call.1} parent=47 // pred_fallthru
          _
        // Predicated region
        $region53: #{tpu_custom_call.1} parent=47 // pred_check
          %p316 = pneg %p68
        $region54: #{tpu_custom_call.1} parent=47 // pred_check_branch
          %318 = sbr.rel (%p316) target = $region56
        $region55: #{tpu_custom_call.1} parent=47 // pred_region
          %320 = dma.done [#allocation6], 8192
        $region56: #{tpu_custom_call.1} parent=47 // pred_fallthru
          _
        // Predicated region
        $region57: #{tpu_custom_call.1} parent=47 // pred_check
          %p321 = pneg %p89
        $region58: #{tpu_custom_call.1} parent=47 // pred_check_branch
          %323 = sbr.rel (%p321) target = $region60
        $region59: #{tpu_custom_call.1} parent=47 // pred_region
          %325 = dma.done [#allocation6], 32
        $region60: #{tpu_custom_call.1} parent=47 // pred_fallthru
          _
        // Predicated region
        $region61: #{tpu_custom_call.1} parent=47 // pred_check
          %p326 = pneg %p131
        $region62: #{tpu_custom_call.1} parent=47 // pred_check_branch
          %328 = sbr.rel (%p326) target = $region64
        $region63: #{tpu_custom_call.1} parent=47 // pred_region
          %330 = dma.done [#allocation9], 32
        $region64: #{tpu_custom_call.1} parent=47 // pred_fallthru
          _
        // Predicated region
        $region65: #{tpu_custom_call.1} parent=47 // pred_check
          %p331 = pneg %p152
        $region66: #{tpu_custom_call.1} parent=47 // pred_check_branch
          %333 = sbr.rel (%p331) target = $region68
        $region67: #{tpu_custom_call.1} parent=47 // pred_region
          %335 = dma.done [#allocation9], 4096
        $region68: #{tpu_custom_call.1} parent=47 // pred_fallthru
          _
        %s336 = sand.u32 %s34, 1
        %s337 = scalar_lea.sflag [#allocation3], %s336
        %s338 = sand.u32 %s34, 1
        %s339 = smul.addr %s338, 48
        %s340 = scalar_lea.vmem [#allocation2], %s339
        %p341 = pneg %p47
        %p342 = pneg %p44
        %p343 = pneg %p68
        %p344 = pneg %p65
        %p345 = pneg %p89
        %p346 = pneg %p86
        %p347 = pneg %p110
        %p348 = pneg %p107
        %p349 = pneg %p131
        %p350 = pneg %p128
        %p351 = pneg %p152
        %p352 = pneg %p149
        %p353 = pneg %p173
        %p354 = pneg %p170
        %p355 = pneg %p199
        %p356 = pneg %p196
        %s357 = sand.u32 %s186, 1
        %s358 = scalar_lea.sflag [#allocation4], %s357
        %s359 = sand.u32 %s186, 1
        %s360 = smul.addr %s359, 24
        %s361 = scalar_lea.vmem [#allocation11], %s360
        %s362 = smul.u32 3, %s26
        %s363 = smul.u32 3, %s26
        %v364 = vld [vmem:[%s310] sm:$0xff]
        %v365 = vld [vmem:[%s310 + $0x8] sm:$0xff]
        %v366 = vld [vmem:[%s310 + $0x10] sm:$0xff]
        %v367 = vld [vmem:[%s310 + $0x18] sm:$0xff]
        %v368 = vld [vmem:[%s310 + $0x20] sm:$0xff]
        %v369 = vld [vmem:[%s310 + $0x28] sm:$0xff]
        %v370 = vld [vmem:[#allocation5] sm:$0xff]
        %v371 = vld [vmem:[#allocation5 + $0x8] sm:$0xff]
        %v372 = vld [vmem:[#allocation5 + $0x10] sm:$0xff]
        %v373 = vld [vmem:[#allocation5 + $0x18] sm:$0xff]
        %v374 = vld [vmem:[#allocation5 + $0x20] sm:$0xff]
        %v375 = vld [vmem:[#allocation5 + $0x28] sm:$0xff]
        %v376 = vld [vmem:[#allocation5 + $0x30] sm:$0xff]
        %v377 = vld [vmem:[#allocation5 + $0x38] sm:$0xff]
        %v378 = vld [vmem:[#allocation5 + $0x40] sm:$0xff]
        %v379 = vld [vmem:[#allocation5 + $0x48] sm:$0xff]
        %v380 = vld [vmem:[#allocation5 + $0x50] sm:$0xff]
        %v381 = vld [vmem:[#allocation5 + $0x58] sm:$0xff]
        %v382 = vld [vmem:[#allocation5 + $0x60] sm:$0xff]
        %v383 = vld [vmem:[#allocation5 + $0x68] sm:$0xff]
        %v384 = vld [vmem:[#allocation5 + $0x70] sm:$0xff]
        %v385 = vld [vmem:[#allocation5 + $0x78] sm:$0xff]
        %v386 = vld [vmem:[#allocation5 + $0x80] sm:$0xff]
        %v387 = vld [vmem:[#allocation5 + $0x88] sm:$0xff]
        %v388 = vld [vmem:[#allocation5 + $0x90] sm:$0xff]
        %v389 = vld [vmem:[#allocation5 + $0x98] sm:$0xff]
        %v390 = vld [vmem:[#allocation5 + $0xa0] sm:$0xff]
        %v391 = vld [vmem:[#allocation5 + $0xa8] sm:$0xff]
        %v392 = vld [vmem:[#allocation5 + $0xb0] sm:$0xff]
        %v393 = vld [vmem:[#allocation5 + $0xb8] sm:$0xff]
        %v394 = vld [vmem:[#allocation5 + $0xc0] sm:$0xff]
        %v395 = vld [vmem:[#allocation5 + $0xc8] sm:$0xff]
        %v396 = vld [vmem:[#allocation5 + $0xd0] sm:$0xff]
        %v397 = vld [vmem:[#allocation5 + $0xd8] sm:$0xff]
        %v398 = vld [vmem:[#allocation5 + $0xe0] sm:$0xff]
        %v399 = vld [vmem:[#allocation5 + $0xe8] sm:$0xff]
        %v400 = vld [vmem:[#allocation5 + $0xf0] sm:$0xff]
        %v401 = vld [vmem:[#allocation5 + $0xf8] sm:$0xff]
        %v402 = vld [vmem:[#allocation5 + $0x100] sm:$0xff]
        %v403 = vld [vmem:[#allocation5 + $0x108] sm:$0xff]
        %v404 = vld [vmem:[#allocation5 + $0x110] sm:$0xff]
        %v405 = vld [vmem:[#allocation5 + $0x118] sm:$0xff]
        %v406 = vld [vmem:[#allocation5 + $0x120] sm:$0xff]
        %v407 = vld [vmem:[#allocation5 + $0x128] sm:$0xff]
        %v408 = vld [vmem:[#allocation5 + $0x130] sm:$0xff]
        %v409 = vld [vmem:[#allocation5 + $0x138] sm:$0xff]
        %v410 = vld [vmem:[#allocation5 + $0x140] sm:$0xff]
        %v411 = vld [vmem:[#allocation5 + $0x148] sm:$0xff]
        %v412 = vld [vmem:[#allocation5 + $0x150] sm:$0xff]
        %v413 = vld [vmem:[#allocation5 + $0x158] sm:$0xff]
        %v414 = vld [vmem:[#allocation5 + $0x160] sm:$0xff]
        %v415 = vld [vmem:[#allocation5 + $0x168] sm:$0xff]
        %v416 = vld [vmem:[#allocation5 + $0x170] sm:$0xff]
        %v417 = vld [vmem:[#allocation5 + $0x178] sm:$0xff]
        %v418 = vld [vmem:[#allocation5 + $0x180] sm:$0xff]
        %v419 = vld [vmem:[#allocation5 + $0x188] sm:$0xff]
        %v420 = vld [vmem:[#allocation5 + $0x190] sm:$0xff]
        %v421 = vld [vmem:[#allocation5 + $0x198] sm:$0xff]
        %v422 = vld [vmem:[#allocation5 + $0x1a0] sm:$0xff]
        %v423 = vld [vmem:[#allocation5 + $0x1a8] sm:$0xff]
        %v424 = vld [vmem:[#allocation5 + $0x1b0] sm:$0xff]
        %v425 = vld [vmem:[#allocation5 + $0x1b8] sm:$0xff]
        %v426 = vld [vmem:[#allocation5 + $0x1c0] sm:$0xff]
        %v427 = vld [vmem:[#allocation5 + $0x1c8] sm:$0xff]
        %v428 = vld [vmem:[#allocation5 + $0x1d0] sm:$0xff]
        %v429 = vld [vmem:[#allocation5 + $0x1d8] sm:$0xff]
        %v430 = vld [vmem:[#allocation5 + $0x1e0] sm:$0xff]
        %v431 = vld [vmem:[#allocation5 + $0x1e8] sm:$0xff]
        %v432 = vld [vmem:[#allocation5 + $0x1f0] sm:$0xff]
        %v433 = vld [vmem:[#allocation5 + $0x1f8] sm:$0xff]
        %v434 = vld [vmem:[#allocation7] sm:$0x3]
        %v436 = vperm.slane %v434, 0
        %v437 = vperm.slane %v434, 1
        %440 = vmatpush.msra.mxu0 %v400
        %441 = vmatpush.msra.mxu0 %v398
        %442 = vmatpush.msra.mxu0 %v396
        %443 = vmatpush.msra.mxu0 %v394
        %444 = vmatpush.msra.mxu0 %v392
        %445 = vmatpush.msra.mxu0 %v390
        %446 = vmatpush.msra.mxu0 %v388
        %447 = vmatpush.msra.mxu0 %v386
        %448 = vmatpush.msra.mxu0 %v384
        %449 = vmatpush.msra.mxu0 %v382
        %450 = vmatpush.msra.mxu0 %v380
        %451 = vmatpush.msra.mxu0 %v378
        %452 = vmatpush.msra.mxu0 %v376
        %453 = vmatpush.msra.mxu0 %v374
        %454 = vmatpush.msra.mxu0 %v372
        %455 = vmatpush.msra.mxu0 %v370
        %456 = vmatmul.f32.gmra.mxu0 %v364
        %v457 = vpop.f32.mrf.mxu0
        %v458 = vadd.f32 %v436, %v457
        %459 = vmatmul.f32.gmra.mxu0 %v366
        %v460 = vpop.f32.mrf.mxu0
        %v461 = vadd.f32 %v436, %v460
        %462 = vmatmul.f32.gmra.mxu0 %v368
        %v463 = vpop.f32.mrf.mxu0
        %v464 = vadd.f32 %v436, %v463
        %465 = vdwg.mxu0
        %466 = vmatpush.msra.mxu0 %v432
        %467 = vmatpush.msra.mxu0 %v430
        %468 = vmatpush.msra.mxu0 %v428
        %469 = vmatpush.msra.mxu0 %v426
        %470 = vmatpush.msra.mxu0 %v424
        %471 = vmatpush.msra.mxu0 %v422
        %472 = vmatpush.msra.mxu0 %v420
        %473 = vmatpush.msra.mxu0 %v418
        %474 = vmatpush.msra.mxu0 %v416
        %475 = vmatpush.msra.mxu0 %v414
        %476 = vmatpush.msra.mxu0 %v412
        %477 = vmatpush.msra.mxu0 %v410
        %478 = vmatpush.msra.mxu0 %v408
        %479 = vmatpush.msra.mxu0 %v406
        %480 = vmatpush.msra.mxu0 %v404
        %481 = vmatpush.msra.mxu0 %v402
        %482 = vmatmul.f32.gmra.mxu0 %v365
        %v483 = vpop.f32.mrf.mxu0
        %v484 = vadd.f32 %v458, %v483
        %485 = vmatmul.f32.gmra.mxu0 %v367
        %v486 = vpop.f32.mrf.mxu0
        %v487 = vadd.f32 %v461, %v486
        %488 = vmatmul.f32.gmra.mxu0 %v369
        %v489 = vpop.f32.mrf.mxu0
        %v490 = vadd.f32 %v464, %v489
        %491 = vdwg.mxu0
        %492 = vmatpush.msra.mxu0 %v401
        %493 = vmatpush.msra.mxu0 %v399
        %494 = vmatpush.msra.mxu0 %v397
        %495 = vmatpush.msra.mxu0 %v395
        %496 = vmatpush.msra.mxu0 %v393
        %497 = vmatpush.msra.mxu0 %v391
        %498 = vmatpush.msra.mxu0 %v389
        %499 = vmatpush.msra.mxu0 %v387
        %500 = vmatpush.msra.mxu0 %v385
        %501 = vmatpush.msra.mxu0 %v383
        %502 = vmatpush.msra.mxu0 %v381
        %503 = vmatpush.msra.mxu0 %v379
        %504 = vmatpush.msra.mxu0 %v377
        %505 = vmatpush.msra.mxu0 %v375
        %506 = vmatpush.msra.mxu0 %v373
        %507 = vmatpush.msra.mxu0 %v371
        %508 = vmatmul.f32.gmra.mxu0 %v364
        %v509 = vpop.f32.mrf.mxu0
        %v510 = vadd.f32 %v437, %v509
        %511 = vmatmul.f32.gmra.mxu0 %v366
        %v512 = vpop.f32.mrf.mxu0
        %v513 = vadd.f32 %v437, %v512
        %514 = vmatmul.f32.gmra.mxu0 %v368
        %v515 = vpop.f32.mrf.mxu0
        %v516 = vadd.f32 %v437, %v515
        %517 = vdwg.mxu0
        %518 = vmatpush.msra.mxu0 %v433
        %519 = vmatpush.msra.mxu0 %v431
        %520 = vmatpush.msra.mxu0 %v429
        %521 = vmatpush.msra.mxu0 %v427
        %522 = vmatpush.msra.mxu0 %v425
        %523 = vmatpush.msra.mxu0 %v423
        %524 = vmatpush.msra.mxu0 %v421
        %525 = vmatpush.msra.mxu0 %v419
        %526 = vmatpush.msra.mxu0 %v417
        %527 = vmatpush.msra.mxu0 %v415
        %528 = vmatpush.msra.mxu0 %v413
        %529 = vmatpush.msra.mxu0 %v411
        %530 = vmatpush.msra.mxu0 %v409
        %531 = vmatpush.msra.mxu0 %v407
        %532 = vmatpush.msra.mxu0 %v405
        %533 = vmatpush.msra.mxu0 %v403
        %534 = vmatmul.f32.gmra.mxu0 %v365
        %v535 = vpop.f32.mrf.mxu0
        %v536 = vadd.f32 %v510, %v535
        %537 = vmatmul.f32.gmra.mxu0 %v367
        %v538 = vpop.f32.mrf.mxu0
        %v539 = vadd.f32 %v513, %v538
        %540 = vmatmul.f32.gmra.mxu0 %v369
        %v541 = vpop.f32.mrf.mxu0
        %v542 = vadd.f32 %v516, %v541
        %543 = vdwg.mxu0
        %v544 = vadd.f32 %v484, %v536
        %545 = vadd.xlane.f32.xlu0 %v544
        %v546 = vpop.xlane.xlu0 %545
        %v547 = vadd.f32 %v487, %v539
        %548 = vadd.xlane.f32.xlu0 %v547
        %v549 = vpop.xlane.xlu0 %548
        %v550 = vadd.f32 %v490, %v542
        %551 = vadd.xlane.f32.xlu0 %v550
        %v552 = vpop.xlane.xlu0 %551
        %v553 = vmul.f32 %v546, 0.00390625
        %v554 = vmul.f32 %v549, 0.00390625
        %v555 = vmul.f32 %v552, 0.00390625
        %v556 = vsub.f32 %v484, %v553
        %v557 = vsub.f32 %v536, %v553
        %v558 = vsub.f32 %v487, %v554
        %v559 = vsub.f32 %v539, %v554
        %v560 = vsub.f32 %v490, %v555
        %v561 = vsub.f32 %v542, %v555
        %v562 = vmul.f32 %v556, %v556
        %v563 = vmul.f32 %v557, %v557
        %v564 = vmul.f32 %v558, %v558
        %v565 = vmul.f32 %v559, %v559
        %v566 = vmul.f32 %v560, %v560
        %v567 = vmul.f32 %v561, %v561
        %v568 = vadd.f32 %v562, %v563
        %569 = vadd.xlane.f32.xlu0 %v568
        %v570 = vpop.xlane.xlu0 %569
        %v571 = vadd.f32 %v564, %v565
        %572 = vadd.xlane.f32.xlu0 %v571
        %v573 = vpop.xlane.xlu0 %572
        %v574 = vadd.f32 %v566, %v567
        %575 = vadd.xlane.f32.xlu0 %v574
        %v576 = vpop.xlane.xlu0 %575
        %v577 = vmul.f32 %v570, 0.00390625
        %v578 = vmul.f32 %v573, 0.00390625
        %v579 = vmul.f32 %v576, 0.00390625
        %v580 = vadd.f32 %v577, 1e-05
        %v581 = vadd.f32 %v578, 1e-05
        %v582 = vadd.f32 %v579, 1e-05
        %v583 = vrsqrt.pop %v580
        %v584 = vmul.f32 %v583, %v580
        %v585 = vmul.f32 %v584, %v583
        %v586 = vmul.f32 0.5, %v585
        %v587 = vsub.f32 1.5, %v586
        %v588 = vmul.f32 %v583, %v587
        %vm589 = vweird.f32 %v580
        %vm590 = vweird.f32 %v583
        %vm591 = vmor %vm589, %vm590
        %v592 = vsel %vm591, %v583, %v588
        %v593 = vrsqrt.pop %v581
        %v594 = vmul.f32 %v593, %v581
        %v595 = vmul.f32 %v594, %v593
        %v596 = vmul.f32 0.5, %v595
        %v597 = vsub.f32 1.5, %v596
        %v598 = vmul.f32 %v593, %v597
        %vm599 = vweird.f32 %v581
        %vm600 = vweird.f32 %v593
        %vm601 = vmor %vm599, %vm600
        %v602 = vsel %vm601, %v593, %v598
        %v603 = vrsqrt.pop %v582
        %v604 = vmul.f32 %v603, %v582
        %v605 = vmul.f32 %v604, %v603
        %v606 = vmul.f32 0.5, %v605
        %v607 = vsub.f32 1.5, %v606
        %v608 = vmul.f32 %v603, %v607
        %vm609 = vweird.f32 %v582
        %vm610 = vweird.f32 %v603
        %vm611 = vmor %vm609, %vm610
        %v612 = vsel %vm611, %v603, %v608
        %v613 = vmul.f32 %v556, %v592
        %v614 = vmul.f32 %v557, %v592
        %v615 = vmul.f32 %v558, %v602
        %v616 = vmul.f32 %v559, %v602
        %v617 = vmul.f32 %v560, %v612
        %v618 = vmul.f32 %v561, %v612
        %v619 = vld [vmem:[%s3] sm:$0x3]
        %v621 = vperm.slane %v619, 0
        %v622 = vperm.slane %v619, 1
        %v625 = vmul.f32 %v613, %v621
        %v626 = vmul.f32 %v614, %v622
        %v627 = vmul.f32 %v615, %v621
        %v628 = vmul.f32 %v616, %v622
        %v629 = vmul.f32 %v617, %v621
        %v630 = vmul.f32 %v618, %v622
        %v631 = vld [vmem:[#allocation8] sm:$0x3]
        %v633 = vperm.slane %v631, 0
        %v634 = vperm.slane %v631, 1
        %v637 = vadd.f32 %v625, %v633
        %v638 = vadd.f32 %v626, %v634
        %v639 = vadd.f32 %v627, %v633
        %v640 = vadd.f32 %v628, %v634
        %v641 = vadd.f32 %v629, %v633
        %v642 = vadd.f32 %v630, %v634
        %v643 = vmul.f32 %v637, 0.5
        %v644 = vmul.f32 %v638, 0.5
        %v645 = vmul.f32 %v639, 0.5
        %v646 = vmul.f32 %v640, 0.5
        %v647 = vmul.f32 %v641, 0.5
        %v648 = vmul.f32 %v642, 0.5
        %v649 = vmul.f32 %v637, 0.70710677
        %v650 = vmul.f32 %v638, 0.70710677
        %v651 = vmul.f32 %v639, 0.70710677
        %v652 = vmul.f32 %v640, 0.70710677
        %v653 = vmul.f32 %v641, 0.70710677
        %v654 = vmul.f32 %v642, 0.70710677
        %v655 = vmul.f32 %v649, %v649
        %v656 = vmin.f32 16.0, %v655
        %v657 = vmul.f32 %v656, 2.1237322e-06
        %v658 = vadd.f32 %v657, 0.00028619796
        %v659 = vmul.f32 %v656, %v658
        %v660 = vadd.f32 %v659, 0.0036580483
        %v661 = vmul.f32 %v656, %v660
        %v662 = vadd.f32 %v661, 0.05243302
        %v663 = vmul.f32 %v656, %v662
        %v664 = vadd.f32 %v663, 0.18741608
        %v665 = vmul.f32 %v656, %v664
        %v666 = vadd.f32 %v665, 1.1283791
        %v667 = vmul.f32 %v649, %v666
        %v668 = vmul.f32 %v656, 3.8918573e-05
        %v669 = vadd.f32 %v668, 0.001143296
        %v670 = vmul.f32 %v656, %v669
        %v671 = vadd.f32 %v670, 0.014752088
        %v672 = vmul.f32 %v656, %v671
        %v673 = vadd.f32 %v672, 0.112945676
        %v674 = vmul.f32 %v656, %v673
        %v675 = vadd.f32 %v674, 0.4994258
        %v676 = vmul.f32 %v656, %v675
        %v677 = vadd.f32 %v676, 1.0
        %v678 = vrcp.pop %v677
        %v679 = vmul.f32 %v677, %v678
        %v680 = vsub.f32 1.0, %v679
        %v681 = vmul.f32 %v678, %v680
        %v682 = vadd.f32 %v678, %v681
        %vm683 = vweird.f32 %v677
        %vm684 = vweird.f32 %v678
        %vm685 = vmor %vm683, %vm684
        %v686 = vsel %vm685, %v678, %v682
        %v687 = vand.u32 2147483647, %v677
        %vm688 = vcmp.eq.f32.partialorder %v687, 8.507059e+37
        %v689 = vand.u32 %v677, 2147483648
        %v690 = vor.u32 1.1754944e-38, %v689
        %v691 = vsel %vm688, %v690, %v686
        %v692 = vmul.f32 %v667, %v691
        %v693 = vmin.f32 %v692, 1.0
        %v694 = vmax.f32 %v693, -1.0
        %v695 = vmul.f32 %v650, %v650
        %v696 = vmin.f32 16.0, %v695
        %v697 = vmul.f32 %v696, 2.1237322e-06
        %v698 = vadd.f32 %v697, 0.00028619796
        %v699 = vmul.f32 %v696, %v698
        %v700 = vadd.f32 %v699, 0.0036580483
        %v701 = vmul.f32 %v696, %v700
        %v702 = vadd.f32 %v701, 0.05243302
        %v703 = vmul.f32 %v696, %v702
        %v704 = vadd.f32 %v703, 0.18741608
        %v705 = vmul.f32 %v696, %v704
        %v706 = vadd.f32 %v705, 1.1283791
        %v707 = vmul.f32 %v650, %v706
        %v708 = vmul.f32 %v696, 3.8918573e-05
        %v709 = vadd.f32 %v708, 0.001143296
        %v710 = vmul.f32 %v696, %v709
        %v711 = vadd.f32 %v710, 0.014752088
        %v712 = vmul.f32 %v696, %v711
        %v713 = vadd.f32 %v712, 0.112945676
        %v714 = vmul.f32 %v696, %v713
        %v715 = vadd.f32 %v714, 0.4994258
        %v716 = vmul.f32 %v696, %v715
        %v717 = vadd.f32 %v716, 1.0
        %v718 = vrcp.pop %v717
        %v719 = vmul.f32 %v717, %v718
        %v720 = vsub.f32 1.0, %v719
        %v721 = vmul.f32 %v718, %v720
        %v722 = vadd.f32 %v718, %v721
        %vm723 = vweird.f32 %v717
        %vm724 = vweird.f32 %v718
        %vm725 = vmor %vm723, %vm724
        %v726 = vsel %vm725, %v718, %v722
        %v727 = vand.u32 2147483647, %v717
        %vm728 = vcmp.eq.f32.partialorder %v727, 8.507059e+37
        %v729 = vand.u32 %v717, 2147483648
        %v730 = vor.u32 1.1754944e-38, %v729
        %v731 = vsel %vm728, %v730, %v726
        %v732 = vmul.f32 %v707, %v731
        %v733 = vmin.f32 %v732, 1.0
        %v734 = vmax.f32 %v733, -1.0
        %v735 = vmul.f32 %v651, %v651
        %v736 = vmin.f32 16.0, %v735
        %v737 = vmul.f32 %v736, 2.1237322e-06
        %v738 = vadd.f32 %v737, 0.00028619796
        %v739 = vmul.f32 %v736, %v738
        %v740 = vadd.f32 %v739, 0.0036580483
        %v741 = vmul.f32 %v736, %v740
        %v742 = vadd.f32 %v741, 0.05243302
        %v743 = vmul.f32 %v736, %v742
        %v744 = vadd.f32 %v743, 0.18741608
        %v745 = vmul.f32 %v736, %v744
        %v746 = vadd.f32 %v745, 1.1283791
        %v747 = vmul.f32 %v651, %v746
        %v748 = vmul.f32 %v736, 3.8918573e-05
        %v749 = vadd.f32 %v748, 0.001143296
        %v750 = vmul.f32 %v736, %v749
        %v751 = vadd.f32 %v750, 0.014752088
        %v752 = vmul.f32 %v736, %v751
        %v753 = vadd.f32 %v752, 0.112945676
        %v754 = vmul.f32 %v736, %v753
        %v755 = vadd.f32 %v754, 0.4994258
        %v756 = vmul.f32 %v736, %v755
        %v757 = vadd.f32 %v756, 1.0
        %v758 = vrcp.pop %v757
        %v759 = vmul.f32 %v757, %v758
        %v760 = vsub.f32 1.0, %v759
        %v761 = vmul.f32 %v758, %v760
        %v762 = vadd.f32 %v758, %v761
        %vm763 = vweird.f32 %v757
        %vm764 = vweird.f32 %v758
        %vm765 = vmor %vm763, %vm764
        %v766 = vsel %vm765, %v758, %v762
        %v767 = vand.u32 2147483647, %v757
        %vm768 = vcmp.eq.f32.partialorder %v767, 8.507059e+37
        %v769 = vand.u32 %v757, 2147483648
        %v770 = vor.u32 1.1754944e-38, %v769
        %v771 = vsel %vm768, %v770, %v766
        %v772 = vmul.f32 %v747, %v771
        %v773 = vmin.f32 %v772, 1.0
        %v774 = vmax.f32 %v773, -1.0
        %v775 = vmul.f32 %v652, %v652
        %v776 = vmin.f32 16.0, %v775
        %v777 = vmul.f32 %v776, 2.1237322e-06
        %v778 = vadd.f32 %v777, 0.00028619796
        %v779 = vmul.f32 %v776, %v778
        %v780 = vadd.f32 %v779, 0.0036580483
        %v781 = vmul.f32 %v776, %v780
        %v782 = vadd.f32 %v781, 0.05243302
        %v783 = vmul.f32 %v776, %v782
        %v784 = vadd.f32 %v783, 0.18741608
        %v785 = vmul.f32 %v776, %v784
        %v786 = vadd.f32 %v785, 1.1283791
        %v787 = vmul.f32 %v652, %v786
        %v788 = vmul.f32 %v776, 3.8918573e-05
        %v789 = vadd.f32 %v788, 0.001143296
        %v790 = vmul.f32 %v776, %v789
        %v791 = vadd.f32 %v790, 0.014752088
        %v792 = vmul.f32 %v776, %v791
        %v793 = vadd.f32 %v792, 0.112945676
        %v794 = vmul.f32 %v776, %v793
        %v795 = vadd.f32 %v794, 0.4994258
        %v796 = vmul.f32 %v776, %v795
        %v797 = vadd.f32 %v796, 1.0
        %v798 = vrcp.pop %v797
        %v799 = vmul.f32 %v797, %v798
        %v800 = vsub.f32 1.0, %v799
        %v801 = vmul.f32 %v798, %v800
        %v802 = vadd.f32 %v798, %v801
        %vm803 = vweird.f32 %v797
        %vm804 = vweird.f32 %v798
        %vm805 = vmor %vm803, %vm804
        %v806 = vsel %vm805, %v798, %v802
        %v807 = vand.u32 2147483647, %v797
        %vm808 = vcmp.eq.f32.partialorder %v807, 8.507059e+37
        %v809 = vand.u32 %v797, 2147483648
        %v810 = vor.u32 1.1754944e-38, %v809
        %v811 = vsel %vm808, %v810, %v806
        %v812 = vmul.f32 %v787, %v811
        %v813 = vmin.f32 %v812, 1.0
        %v814 = vmax.f32 %v813, -1.0
        %v815 = vmul.f32 %v653, %v653
        %v816 = vmin.f32 16.0, %v815
        %v817 = vmul.f32 %v816, 2.1237322e-06
        %v818 = vadd.f32 %v817, 0.00028619796
        %v819 = vmul.f32 %v816, %v818
        %v820 = vadd.f32 %v819, 0.0036580483
        %v821 = vmul.f32 %v816, %v820
        %v822 = vadd.f32 %v821, 0.05243302
        %v823 = vmul.f32 %v816, %v822
        %v824 = vadd.f32 %v823, 0.18741608
        %v825 = vmul.f32 %v816, %v824
        %v826 = vadd.f32 %v825, 1.1283791
        %v827 = vmul.f32 %v653, %v826
        %v828 = vmul.f32 %v816, 3.8918573e-05
        %v829 = vadd.f32 %v828, 0.001143296
        %v830 = vmul.f32 %v816, %v829
        %v831 = vadd.f32 %v830, 0.014752088
        %v832 = vmul.f32 %v816, %v831
        %v833 = vadd.f32 %v832, 0.112945676
        %v834 = vmul.f32 %v816, %v833
        %v835 = vadd.f32 %v834, 0.4994258
        %v836 = vmul.f32 %v816, %v835
        %v837 = vadd.f32 %v836, 1.0
        %v838 = vrcp.pop %v837
        %v839 = vmul.f32 %v837, %v838
        %v840 = vsub.f32 1.0, %v839
        %v841 = vmul.f32 %v838, %v840
        %v842 = vadd.f32 %v838, %v841
        %vm843 = vweird.f32 %v837
        %vm844 = vweird.f32 %v838
        %vm845 = vmor %vm843, %vm844
        %v846 = vsel %vm845, %v838, %v842
        %v847 = vand.u32 2147483647, %v837
        %vm848 = vcmp.eq.f32.partialorder %v847, 8.507059e+37
        %v849 = vand.u32 %v837, 2147483648
        %v850 = vor.u32 1.1754944e-38, %v849
        %v851 = vsel %vm848, %v850, %v846
        %v852 = vmul.f32 %v827, %v851
        %v853 = vmin.f32 %v852, 1.0
        %v854 = vmax.f32 %v853, -1.0
        %v855 = vmul.f32 %v654, %v654
        %v856 = vmin.f32 16.0, %v855
        %v857 = vmul.f32 %v856, 2.1237322e-06
        %v858 = vadd.f32 %v857, 0.00028619796
        %v859 = vmul.f32 %v856, %v858
        %v860 = vadd.f32 %v859, 0.0036580483
        %v861 = vmul.f32 %v856, %v860
        %v862 = vadd.f32 %v861, 0.05243302
        %v863 = vmul.f32 %v856, %v862
        %v864 = vadd.f32 %v863, 0.18741608
        %v865 = vmul.f32 %v856, %v864
        %v866 = vadd.f32 %v865, 1.1283791
        %v867 = vmul.f32 %v654, %v866
        %v868 = vmul.f32 %v856, 3.8918573e-05
        %v869 = vadd.f32 %v868, 0.001143296
        %v870 = vmul.f32 %v856, %v869
        %v871 = vadd.f32 %v870, 0.014752088
        %v872 = vmul.f32 %v856, %v871
        %v873 = vadd.f32 %v872, 0.112945676
        %v874 = vmul.f32 %v856, %v873
        %v875 = vadd.f32 %v874, 0.4994258
        %v876 = vmul.f32 %v856, %v875
        %v877 = vadd.f32 %v876, 1.0
        %v878 = vrcp.pop %v877
        %v879 = vmul.f32 %v877, %v878
        %v880 = vsub.f32 1.0, %v879
        %v881 = vmul.f32 %v878, %v880
        %v882 = vadd.f32 %v878, %v881
        %vm883 = vweird.f32 %v877
        %vm884 = vweird.f32 %v878
        %vm885 = vmor %vm883, %vm884
        %v886 = vsel %vm885, %v878, %v882
        %v887 = vand.u32 2147483647, %v877
        %vm888 = vcmp.eq.f32.partialorder %v887, 8.507059e+37
        %v889 = vand.u32 %v877, 2147483648
        %v890 = vor.u32 1.1754944e-38, %v889
        %v891 = vsel %vm888, %v890, %v886
        %v892 = vmul.f32 %v867, %v891
        %v893 = vmin.f32 %v892, 1.0
        %v894 = vmax.f32 %v893, -1.0
        %v895 = vadd.f32 %v694, 1.0
        %v896 = vadd.f32 %v734, 1.0
        %v897 = vadd.f32 %v774, 1.0
        %v898 = vadd.f32 %v814, 1.0
        %v899 = vadd.f32 %v854, 1.0
        %v900 = vadd.f32 %v894, 1.0
        %v901 = vmul.f32 %v643, %v895
        %v902 = vmul.f32 %v644, %v896
        %v903 = vmul.f32 %v645, %v897
        %v904 = vmul.f32 %v646, %v898
        %v905 = vmul.f32 %v647, %v899
        %v906 = vmul.f32 %v648, %v900
        %v907 = vld [vmem:[#allocation10] sm:$0xff]
        %v908 = vld [vmem:[#allocation10 + $0x8] sm:$0xff]
        %v909 = vld [vmem:[#allocation10 + $0x10] sm:$0xff]
        %v910 = vld [vmem:[#allocation10 + $0x18] sm:$0xff]
        %v911 = vld [vmem:[#allocation10 + $0x20] sm:$0xff]
        %v912 = vld [vmem:[#allocation10 + $0x28] sm:$0xff]
        %v913 = vld [vmem:[#allocation10 + $0x30] sm:$0xff]
        %v914 = vld [vmem:[#allocation10 + $0x38] sm:$0xff]
        %v915 = vld [vmem:[#allocation10 + $0x40] sm:$0xff]
        %v916 = vld [vmem:[#allocation10 + $0x48] sm:$0xff]
        %v917 = vld [vmem:[#allocation10 + $0x50] sm:$0xff]
        %v918 = vld [vmem:[#allocation10 + $0x58] sm:$0xff]
        %v919 = vld [vmem:[#allocation10 + $0x60] sm:$0xff]
        %v920 = vld [vmem:[#allocation10 + $0x68] sm:$0xff]
        %v921 = vld [vmem:[#allocation10 + $0x70] sm:$0xff]
        %v922 = vld [vmem:[#allocation10 + $0x78] sm:$0xff]
        %v923 = vld [vmem:[#allocation10 + $0x80] sm:$0xff]
        %v924 = vld [vmem:[#allocation10 + $0x88] sm:$0xff]
        %v925 = vld [vmem:[#allocation10 + $0x90] sm:$0xff]
        %v926 = vld [vmem:[#allocation10 + $0x98] sm:$0xff]
        %v927 = vld [vmem:[#allocation10 + $0xa0] sm:$0xff]
        %v928 = vld [vmem:[#allocation10 + $0xa8] sm:$0xff]
        %v929 = vld [vmem:[#allocation10 + $0xb0] sm:$0xff]
        %v930 = vld [vmem:[#allocation10 + $0xb8] sm:$0xff]
        %v931 = vld [vmem:[#allocation10 + $0xc0] sm:$0xff]
        %v932 = vld [vmem:[#allocation10 + $0xc8] sm:$0xff]
        %v933 = vld [vmem:[#allocation10 + $0xd0] sm:$0xff]
        %v934 = vld [vmem:[#allocation10 + $0xd8] sm:$0xff]
        %v935 = vld [vmem:[#allocation10 + $0xe0] sm:$0xff]
        %v936 = vld [vmem:[#allocation10 + $0xe8] sm:$0xff]
        %v937 = vld [vmem:[#allocation10 + $0xf0] sm:$0xff]
        %v938 = vld [vmem:[#allocation10 + $0xf8] sm:$0xff]
        %v939 = vld [vmem:[%s6] sm:$0x1]
        %v941 = vperm.slane %v939, 0
        %943 = vmatpush.msra.mxu0 %v922
        %944 = vmatpush.msra.mxu0 %v921
        %945 = vmatpush.msra.mxu0 %v920
        %946 = vmatpush.msra.mxu0 %v919
        %947 = vmatpush.msra.mxu0 %v918
        %948 = vmatpush.msra.mxu0 %v917
        %949 = vmatpush.msra.mxu0 %v916
        %950 = vmatpush.msra.mxu0 %v915
        %951 = vmatpush.msra.mxu0 %v914
        %952 = vmatpush.msra.mxu0 %v913
        %953 = vmatpush.msra.mxu0 %v912
        %954 = vmatpush.msra.mxu0 %v911
        %955 = vmatpush.msra.mxu0 %v910
        %956 = vmatpush.msra.mxu0 %v909
        %957 = vmatpush.msra.mxu0 %v908
        %958 = vmatpush.msra.mxu0 %v907
        %959 = vmatmul.f32.gmra.mxu0 %v901
        %v960 = vpop.f32.mrf.mxu0
        %v961 = vadd.f32 %v941, %v960
        %962 = vmatmul.f32.gmra.mxu0 %v903
        %v963 = vpop.f32.mrf.mxu0
        %v964 = vadd.f32 %v941, %v963
        %965 = vmatmul.f32.gmra.mxu0 %v905
        %v966 = vpop.f32.mrf.mxu0
        %v967 = vadd.f32 %v941, %v966
        %968 = vdwg.mxu0
        %969 = vmatpush.msra.mxu0 %v938
        %970 = vmatpush.msra.mxu0 %v937
        %971 = vmatpush.msra.mxu0 %v936
        %972 = vmatpush.msra.mxu0 %v935
        %973 = vmatpush.msra.mxu0 %v934
        %974 = vmatpush.msra.mxu0 %v933
        %975 = vmatpush.msra.mxu0 %v932
        %976 = vmatpush.msra.mxu0 %v931
        %977 = vmatpush.msra.mxu0 %v930
        %978 = vmatpush.msra.mxu0 %v929
        %979 = vmatpush.msra.mxu0 %v928
        %980 = vmatpush.msra.mxu0 %v927
        %981 = vmatpush.msra.mxu0 %v926
        %982 = vmatpush.msra.mxu0 %v925
        %983 = vmatpush.msra.mxu0 %v924
        %984 = vmatpush.msra.mxu0 %v923
        %985 = vmatmul.f32.gmra.mxu0 %v902
        %v986 = vpop.f32.mrf.mxu0
        %v987 = vadd.f32 %v961, %v986
        %988 = vmatmul.f32.gmra.mxu0 %v904
        %v989 = vpop.f32.mrf.mxu0
        %v990 = vadd.f32 %v964, %v989
        %991 = vmatmul.f32.gmra.mxu0 %v906
        %v992 = vpop.f32.mrf.mxu0
        %v993 = vadd.f32 %v967, %v992
        %994 = vdwg.mxu0
        %995 = vst [vmem:[%s361] sm:$0xff] %v987
        %996 = vst [vmem:[%s361 + $0x8] sm:$0xff] %v990
        %997 = vst [vmem:[%s361 + $0x10] sm:$0xff] %v993
        %s998 = sand.u32 %s186, 1
        %s999 = scalar_lea.sflag [#allocation4], %s998
        %s1000 = sand.u32 %s186, 1
        %s1001 = smul.addr %s1000, 24
        %s1002 = scalar_lea.vmem [#allocation11], %s1001
        // Predicated region
        $region69: #{tpu_custom_call.1} parent=47 // pred_check
          %p1003 = pneg %p196
        $region70: #{tpu_custom_call.1} parent=47 // pred_check_branch
          %1005 = sbr.rel (%p1003) target = $region72
        $region71: #{tpu_custom_call.1} parent=47 // pred_region
          %s1006 = smul.u32 3, %s26
          %1008 = vsyncadd %s999, 0
          %s1009 = smul.addr %s1006, 8
          %s1010 = scalar_lea.hbm %s7, %s1009
          %s1011 = sshll.u32 %s1002, 4
          %s1012 = int_to_ptr.vmem [resolvable:$true] %s1011
          %s1013 = sshll.u32 %s1010, 4
          %s1014 = int_to_ptr.hbm [resolvable:$true] %s1013
          %1019 = dma.vmem_to_hbm [thread:$0]  %s1012, 384, %s1014, %s999, 128, 128, 8
        $region72: #{tpu_custom_call.1} parent=47 // pred_fallthru
          _
      $region48: #{tpu_custom_call.1} parent=5 // pred_fallthru
        _
      %p1020 = scmp.le.s32.totalorder 2, %s21
      // Predicated region
      $region73: #{tpu_custom_call.1} parent=5 // pred_check
        %p1021 = pneg %p1020
      $region74: #{tpu_custom_call.1} parent=5 // pred_check_branch
        %1023 = sbr.rel (%p1021) target = $region76
      $region75: #{tpu_custom_call.1} parent=5 // pred_region
        %s1024 = ssub.s32 %s21, 2
        // Predicated region
        $region77: #{tpu_custom_call.1} parent=75 // pred_check
          %p1025 = pneg %p202
        $region78: #{tpu_custom_call.1} parent=75 // pred_check_branch
          %1027 = sbr.rel (%p1025) target = $region80
        $region79: #{tpu_custom_call.1} parent=75 // pred_region
          %s1028 = sand.u32 %s187, 1
          %s1029 = scalar_lea.sflag [#allocation4], %s1028
          %s1030 = sand.u32 %s187, 1
          %s1031 = smul.addr %s1030, 24
          %s1032 = scalar_lea.vmem [#allocation11], %s1031
          %1034 = dma.done %s1029, 384
        $region80: #{tpu_custom_call.1} parent=75 // pred_fallthru
          _
      $region76: #{tpu_custom_call.1} parent=5 // pred_fallthru
        _
    $region6: #{tpu_custom_call.1} parent=1 // loop_footer
      %s25 = sadd.s32 1, %s21
    $region7: #{tpu_custom_call.1} parent=1 // loop_footer_branch
      %20 = sbr.rel target = $region3
    $region8: #{tpu_custom_call.1} parent=1 // loop_exit
      _
    %1035 = vsyncpa [#allocation3], 1
    %s1036 = scalar_lea.sflag [#allocation3], 1
    %1037 = vsyncpa %s1036, 1
    %1038 = vsyncpa [#allocation6], 1
    %1039 = vsyncpa [#allocation9], 1
    %1040 = vsyncpa [#allocation4], 1
    %s1041 = scalar_lea.sflag [#allocation4], 1
    %1042 = vsyncpa %s1041, 1

</llo_original>
